<compile_context>
chip_gen: v7x
topology: tpu7x:2x2x1
jax: 0.10.0
libtpu: 0.0.40
codegen_flags: <defaults>
</compile_context>

<pallas_src>
import math
from functools import partial

import jax
import jax.numpy as jnp
from jax.experimental import pallas as pl
from jax.experimental.pallas import tpu as pltpu


def _self_attention_kernel(x_ref, w_ref, b_ref, out_ref,
                           *, heads, head_dim, valid_len):
    """One grid step == (one batch element, one head group).

    x_ref   : (1, S, D)        VMEM f32   full hidden states for this batch
    w_ref   : (1, D, 3*Wg)     VMEM bf16  fused [Wq*s | Wk | Wv] for group
    b_ref   : (1, 1, 3*Wg)     VMEM f32   fused [bq*s | bk | bv] for group
    out_ref : (1, S, Wg)       VMEM f32   this group's output columns
    """
    S = x_ref.shape[1]
    Wg = heads * head_dim

    # --- Fused QKV projection for this head group: one MXU matmul,
    #     bf16 inputs / f32 accumulation, weight already bf16 (no in-kernel cast).
    x_bf = x_ref[0].astype(jnp.bfloat16)                       # (S, D)
    qkv = (jnp.dot(x_bf, w_ref[0], preferred_element_type=jnp.float32)
           + b_ref[0])                                          # (S, 3*Wg) f32

    # --- Split heads with a single reshape per tensor (query-major layout).
    q = qkv[:, 0 * Wg:1 * Wg].reshape(S, heads, head_dim).astype(jnp.bfloat16)
    k = qkv[:, 1 * Wg:2 * Wg].reshape(S, heads, head_dim).astype(jnp.bfloat16)
    v = qkv[:, 2 * Wg:3 * Wg].reshape(S, heads, head_dim).astype(jnp.bfloat16)

    # --- Head-batched attention scores.  The 1/sqrt(hd) scale is already
    #     folded into the Q weight columns, so no per-step multiply here.
    scores = jnp.einsum('qhd,khd->hqk', q, k,
                        preferred_element_type=jnp.float32)     # (H, S, S) f32

    # --- Mask padded key positions (only traced when padding was added).
    if valid_len < S:
        key_idx = jax.lax.broadcasted_iota(jnp.int32, (1, 1, S), 2)
        scores = jnp.where(key_idx < valid_len, scores, -1e30)

    # --- Numerically stable softmax in f32; reciprocal on the EUP.
    m = jnp.max(scores, axis=-1, keepdims=True)
    e = jnp.exp(scores - m)
    denom = jnp.sum(e, axis=-1, keepdims=True)
    probs = e * pl.reciprocal(denom, approx=True)               # (H, S, S) f32

    # TODO(synk): attention-probs dropout / head_mask are identity at inference; not applied.

    # --- Context emitted directly in query-major order -> one lane-dense store.
    ctx = jnp.einsum('hqk,khd->qhd', probs.astype(jnp.bfloat16), v,
                     preferred_element_type=jnp.float32)        # (S, H, hd) f32
    out_ref[0] = ctx.reshape(S, Wg).astype(out_ref.dtype)


def vit_mae_self_attention(hidden_states, wq, wk, wv, bq, bk, bv,
                           *, num_heads, head_groups=None):
    """hidden_states: (B, S, D) float32.  Returns context_layer (B, S, D) f32."""
    B, S, D = hidden_states.shape
    assert D % num_heads == 0
    hd = D // num_heads

    # Pick a head-group count G so each group's lane width (hpg*hd) is either
    # the full hidden size or a multiple of 128 (lane-dense blocks); this
    # gives v7x a second parallel grid axis and splits scores/weight VMEM.
    if head_groups is None:
        head_groups = 1
        for g in (2, 4):
            if num_heads % g == 0 and ((num_heads // g) * hd) % 128 == 0:
                head_groups = g
                break
    G = head_groups
    assert num_heads % G == 0
    hpg = num_heads // G
    Wg = hpg * hd

    # Pad the sequence to a multiple of 8 sublanes; padded keys get masked
    # inside the kernel, padded query rows are sliced off below.
    S_pad = ((S + 7) // 8) * 8
    x = hidden_states
    if S_pad != S:
        x = jnp.pad(x, ((0, 0), (0, S_pad - S), (0, 0)))

    # Build the per-group fused QKV weight / bias once, outside the kernel.
    # The 1/sqrt(hd) softmax scale is folded into the Q columns; the weight
    # is stored in bf16 (native MXU input dtype), bias stays f32 (tiny, and
    # it is added to the f32 accumulator).
    inv_sqrt_d = 1.0 / math.sqrt(hd)

    def cols(a, g):
        return a[:, g * Wg:(g + 1) * Wg]

    w_groups = [jnp.concatenate([cols(wq, g) * inv_sqrt_d, cols(wk, g), cols(wv, g)],
                                axis=1) for g in range(G)]
    b_groups = [jnp.concatenate([cols(bq, g) * inv_sqrt_d, cols(bk, g), cols(bv, g)],
                                axis=1) for g in range(G)]
    w_qkv = jnp.stack(w_groups, axis=0).astype(jnp.bfloat16)    # (G, D, 3*Wg)
    b_qkv = jnp.stack(b_groups, axis=0)                         # (G, 1, 3*Wg) f32

    kernel = partial(_self_attention_kernel,
                     heads=hpg, head_dim=hd, valid_len=S)

    grid_spec = pltpu.PrefetchScalarGridSpec(
        num_scalar_prefetch=0,
        grid=(B, G),
        in_specs=[
            pl.BlockSpec((1, S_pad, D), lambda b, g: (b, 0, 0)),     # hidden_states
            pl.BlockSpec((1, D, 3 * Wg), lambda b, g: (g, 0, 0)),    # fused W (bf16)
            pl.BlockSpec((1, 1, 3 * Wg), lambda b, g: (g, 0, 0)),    # fused b (f32)
        ],
        out_specs=pl.BlockSpec((1, S_pad, Wg), lambda b, g: (b, 0, g)),
    )

    # Advisory cost estimate: QKV projection + QK^T + PV, exp per score.
    flops = int(B * (2 * S_pad * D * (3 * D)
                     + 2 * 2 * num_heads * S_pad * S_pad * hd))
    cost = pl.CostEstimate(
        flops=flops,
        transcendentals=int(B * num_heads * S_pad * S_pad),
        bytes_accessed=int(x.size * 4 + w_qkv.size * 2 + b_qkv.size * 4
                           + B * S_pad * D * 4),
    )

    out = pl.pallas_call(
        kernel,
        out_shape=jax.ShapeDtypeStruct((B, S_pad, D), jnp.float32),
        grid_spec=grid_spec,
        compiler_params=pltpu.CompilerParams(
            dimension_semantics=("parallel", "parallel")),
        cost_estimate=cost,
    )(x, w_qkv, b_qkv)

    if S_pad != S:
        out = out[:, :S, :]
    return out


def _reference(hidden_states, wq, wk, wv, bq, bk, bv, *, num_heads):
    """Pure-JAX reference reproducing the PyTorch module semantics (f32)."""
    B, S, D = hidden_states.shape
    hd = D // num_heads

    def split(x):  # (B, S, D) -> (B, H, S, hd)
        return x.reshape(B, S, num_heads, hd).transpose(0, 2, 1, 3)

    q = split(hidden_states @ wq + bq[0])
    k = split(hidden_states @ wk + bk[0])
    v = split(hidden_states @ wv + bv[0])

    scores = jnp.einsum('bhqd,bhkd->bhqk', q, k) / math.sqrt(hd)
    probs = jax.nn.softmax(scores, axis=-1)
    ctx = jnp.einsum('bhqk,bhkd->bhqd', probs, v)               # (B, H, S, hd)
    ctx = ctx.transpose(0, 2, 1, 3).reshape(B, S, D)
    return ctx


if __name__ == "__main__":
    # Small shapes consistent with the module: hidden_size=32, 4 heads, seq=8.
    B, S, D = 2, 8, 32
    NUM_HEADS = 4

    key = jax.random.PRNGKey(0)
    k_x, k_wq, k_wk, k_wv, k_bq, k_bk, k_bv, k_x2 = jax.random.split(key, 8)

    hidden_states = jax.random.normal(k_x, (B, S, D), dtype=jnp.float32)

    # Deterministic synthetic parameters (qkv_bias=True).
    scale = 1.0 / math.sqrt(D)
    wq = jax.random.normal(k_wq, (D, D), dtype=jnp.float32) * scale
    wk = jax.random.normal(k_wk, (D, D), dtype=jnp.float32) * scale
    wv = jax.random.normal(k_wv, (D, D), dtype=jnp.float32) * scale
    bq = jax.random.normal(k_bq, (1, D), dtype=jnp.float32) * 0.02
    bk = jax.random.normal(k_bk, (1, D), dtype=jnp.float32) * 0.02
    bv = jax.random.normal(k_bv, (1, D), dtype=jnp.float32) * 0.02

    out = vit_mae_self_attention(hidden_states, wq, wk, wv, bq, bk, bv,
                                 num_heads=NUM_HEADS)
    out = jax.block_until_ready(out)

    ref = _reference(hidden_states, wq, wk, wv, bq, bk, bv,
                     num_heads=NUM_HEADS)
    assert out.shape == (B, S, D)
    # bf16 MXU inputs + approx reciprocal -> slightly looser tolerance.
    assert jnp.allclose(out, ref, atol=2e-2, rtol=2e-2), "mismatch vs reference"

    # Unaligned sequence length exercises the padding + key-mask path
    # (e.g. ViT-MAE's 50 / 197 tokens).
    S2 = 7
    hidden_states2 = jax.random.normal(k_x2, (B, S2, D), dtype=jnp.float32)
    out2 = vit_mae_self_attention(hidden_states2, wq, wk, wv, bq, bk, bv,
                                  num_heads=NUM_HEADS)
    out2 = jax.block_until_ready(out2)
    ref2 = _reference(hidden_states2, wq, wk, wv, bq, bk, bv,
                      num_heads=NUM_HEADS)
    assert out2.shape == (B, S2, D)
    assert jnp.allclose(out2, ref2, atol=2e-2, rtol=2e-2), "mismatch vs reference (padded)"

    print("KERNEL_OK")
</pallas_src>

<mosaic_0001>
module attributes {stable_mosaic.version = 11 : i64} {
  func.func @_self_attention_kernel(%arg0: i32, %arg1: i32, %arg2: memref<1x8x32xf32, #tpu.memory_space<vmem>>, %arg3: memref<1x32x96xbf16, #tpu.memory_space<vmem>>, %arg4: memref<1x1x96xf32, #tpu.memory_space<vmem>>, %arg5: memref<1x8x32xf32, #tpu.memory_space<vmem>>) attributes {dimension_semantics = [#tpu.dimension_semantics<parallel>, #tpu.dimension_semantics<parallel>], iteration_bounds = array<i64: 2, 1>, scalar_prefetch = 0 : i64, scratch_operands = 0 : i64, tpu.core_type = #tpu.core_type<tc>, window_params = [{transform_indices = @transform_0, window_bounds = array<i64: 1, 8, 32>}, {transform_indices = @transform_1, window_bounds = array<i64: 1, 32, 96>}, {transform_indices = @transform_2, window_bounds = array<i64: 1, 1, 96>}, {transform_indices = @transform_3, window_bounds = array<i64: 1, 8, 32>}]} {
    %c0 = arith.constant 0 : index
    %c0_0 = arith.constant 0 : index
    %c0_1 = arith.constant 0 : index
    %0 = vector.load %arg2[%c0, %c0_0, %c0_1] : memref<1x8x32xf32, #tpu.memory_space<vmem>>, vector<1x8x32xf32>
    %1 = vector.shape_cast %0 : vector<1x8x32xf32> to vector<8x32xf32>
    %2 = arith.truncf %1 : vector<8x32xf32> to vector<8x32xbf16>
    %c0_2 = arith.constant 0 : index
    %c0_3 = arith.constant 0 : index
    %c0_4 = arith.constant 0 : index
    %3 = vector.load %arg3[%c0_2, %c0_3, %c0_4] : memref<1x32x96xbf16, #tpu.memory_space<vmem>>, vector<1x32x96xbf16>
    %4 = vector.shape_cast %3 : vector<1x32x96xbf16> to vector<32x96xbf16>
    %cst = arith.constant dense<0.000000e+00> : vector<8x96xf32>
    %5 = tpu.matmul %2, %4, %cst {dimension_numbers = #tpu.dot_dimension_numbers<[1], [0], [0], [1], [0, 0, 1, 1], [], []>} : vector<8x32xbf16>, vector<32x96xbf16>, vector<8x96xf32> -> vector<8x96xf32>
    %c0_5 = arith.constant 0 : index
    %c0_6 = arith.constant 0 : index
    %c0_7 = arith.constant 0 : index
    %6 = vector.load %arg4[%c0_5, %c0_6, %c0_7] : memref<1x1x96xf32, #tpu.memory_space<vmem>>, vector<1x1x96xf32>
    %7 = vector.shape_cast %6 : vector<1x1x96xf32> to vector<1x96xf32>
    %8 = vector.broadcast %7 : vector<1x96xf32> to vector<8x96xf32>
    %9 = arith.addf %5, %8 : vector<8x96xf32>
    %10 = vector.extract_strided_slice %9 {offsets = [0, 0], sizes = [8, 32], strides = [1, 1]} : vector<8x96xf32> to vector<8x32xf32>
    %11 = vector.shape_cast %10 : vector<8x32xf32> to vector<8x4x8xf32>
    %12 = arith.truncf %11 : vector<8x4x8xf32> to vector<8x4x8xbf16>
    %13 = vector.extract_strided_slice %9 {offsets = [0, 32], sizes = [8, 32], strides = [1, 1]} : vector<8x96xf32> to vector<8x32xf32>
    %14 = vector.shape_cast %13 : vector<8x32xf32> to vector<8x4x8xf32>
    %15 = arith.truncf %14 : vector<8x4x8xf32> to vector<8x4x8xbf16>
    %16 = vector.extract_strided_slice %9 {offsets = [0, 64], sizes = [8, 32], strides = [1, 1]} : vector<8x96xf32> to vector<8x32xf32>
    %17 = vector.shape_cast %16 : vector<8x32xf32> to vector<8x4x8xf32>
    %18 = arith.truncf %17 : vector<8x4x8xf32> to vector<8x4x8xbf16>
    "tpu.trace_start"() <{level = 10 : i32, message = "qhd,khd->hqk"}> : () -> ()
    %cst_8 = arith.constant dense<0.000000e+00> : vector<4x8x8xf32>
    %19 = tpu.matmul %12, %15, %cst_8 {dimension_numbers = #tpu.dot_dimension_numbers<[2], [2], [0], [0], [0, 1, 0, 0, 1, 0], [1], [1]>} : vector<8x4x8xbf16>, vector<8x4x8xbf16>, vector<4x8x8xf32> -> vector<4x8x8xf32>
    "tpu.trace_stop"() : () -> ()
    %cst_9 = arith.constant dense<0xFF800000> : vector<4x8xf32>
    %20 = vector.multi_reduction <maximumf>, %19, %cst_9 [2] : vector<4x8x8xf32> to vector<4x8xf32>
    %21 = vector.shape_cast %20 : vector<4x8xf32> to vector<4x8x1xf32>
    %22 = vector.broadcast %21 : vector<4x8x1xf32> to vector<4x8x8xf32>
    %23 = arith.subf %19, %22 : vector<4x8x8xf32>
    %24 = math.exp %23 : vector<4x8x8xf32>
    %cst_10 = arith.constant dense<0.000000e+00> : vector<4x8xf32>
    %25 = vector.multi_reduction <add>, %24, %cst_10 [2] : vector<4x8x8xf32> to vector<4x8xf32>
    %26 = vector.shape_cast %25 : vector<4x8xf32> to vector<4x8x1xf32>
    %27 = tpu.reciprocal %26 {approx = true} : vector<4x8x1xf32> -> vector<4x8x1xf32>
    %28 = vector.broadcast %27 : vector<4x8x1xf32> to vector<4x8x8xf32>
    %29 = arith.mulf %24, %28 : vector<4x8x8xf32>
    %30 = arith.truncf %29 : vector<4x8x8xf32> to vector<4x8x8xbf16>
    "tpu.trace_start"() <{level = 10 : i32, message = "hqk,khd->qhd"}> : () -> ()
    %cst_11 = arith.constant dense<0.000000e+00> : vector<4x8x8xf32>
    %31 = tpu.matmul %18, %30, %cst_11 {dimension_numbers = #tpu.dot_dimension_numbers<[0], [2], [2], [1], [0, 1, 0, 2, 1, 1], [1], [0]>} : vector<8x4x8xbf16>, vector<4x8x8xbf16>, vector<4x8x8xf32> -> vector<4x8x8xf32>
    %32 = tpu.transpose %31, [2, 0, 1] : vector<4x8x8xf32> -> vector<8x4x8xf32>
    "tpu.trace_stop"() : () -> ()
    %33 = vector.shape_cast %32 : vector<8x4x8xf32> to vector<8x32xf32>
    %c0_12 = arith.constant 0 : index
    %c0_13 = arith.constant 0 : index
    %c0_14 = arith.constant 0 : index
    %34 = vector.load %arg5[%c0_12, %c0_13, %c0_14] : memref<1x8x32xf32, #tpu.memory_space<vmem>>, vector<1x8x32xf32>
    %35 = vector.shape_cast %34 : vector<1x8x32xf32> to vector<8x32xf32>
    %36 = vector.shape_cast %33 : vector<8x32xf32> to vector<1x8x32xf32>
    tpu.vector_store %arg5[%c0_12, %c0_13, %c0_14], %36 {strides = array<i32>} : memref<1x8x32xf32, #tpu.memory_space<vmem>>, vector<1x8x32xf32>,
    return
  }
  func.func @transform_0(%arg0: i32, %arg1: i32) -> (i32, i32, i32) {
    %c0_i32 = arith.constant 0 : i32
    %c0_i32_0 = arith.constant 0 : i32
    %c0_i32_1 = arith.constant 0 : i32
    return %arg0, %c0_i32, %c0_i32_0 : i32, i32, i32
  }
  func.func @transform_1(%arg0: i32, %arg1: i32) -> (i32, i32, i32) {
    %c0_i32 = arith.constant 0 : i32
    %c0_i32_0 = arith.constant 0 : i32
    %c0_i32_1 = arith.constant 0 : i32
    return %arg1, %c0_i32, %c0_i32_0 : i32, i32, i32
  }
  func.func @transform_2(%arg0: i32, %arg1: i32) -> (i32, i32, i32) {
    %c0_i32 = arith.constant 0 : i32
    %c0_i32_0 = arith.constant 0 : i32
    %c0_i32_1 = arith.constant 0 : i32
    return %arg1, %c0_i32, %c0_i32_0 : i32, i32, i32
  }
  func.func @transform_3(%arg0: i32, %arg1: i32) -> (i32, i32, i32) {
    %c0_i32 = arith.constant 0 : i32
    %c0_i32_0 = arith.constant 0 : i32
    return %arg0, %c0_i32, %arg1 : i32, i32, i32
  }
}

</mosaic_0001>

<llo_original>
// kernel: tpu_custom_call.1
$region0: #{tpu_custom_call.1}
  #allocation0 [shape = 'u32[]', space=smem, size = 0x4, offset = 0x4, fixed_abs, tag = 'smem constant byte address 0x4 - core index']
  #allocation1 [shape = 'u32[144,128]{1,0:T(1,128)}', space=vmem, size = 0x12000, scoped, tag = 'internal scratch']
  %s0 = inlined_call_operand.hbm [shape: f32[2,8,32], index: 0, kind: input, shape index: {}]
  %s1 = inlined_call_operand.hbm [shape: bf16[1,32,96], index: 1, kind: input, shape index: {}]
  %s2 = inlined_call_operand.vmem [shape: f32[1,1,96], index: 2, kind: input, shape index: {}]
  %s3 = inlined_call_operand.hbm [shape: f32[2,8,32], index: 3, kind: output, shape index: {}]
  %s4 = sld [smem:[#allocation0]]
  $region53: #{tpu_custom_call.1} parent=0
    _
  %s6 = ssub.s32 1, %s4
  %s7 = scalar_select 0, %s6, %s4
  $region1: #{tpu_custom_call.1} parent=0
    #allocation2 [shape = 'u8[8192]{0}', space=vmem, size = 0x2000, scoped, tag = 'input window, operand 0']
    #allocation3 [shape = 's32[2]{0}', space=sflag, size = 0x8, scoped, tag = 'scoped memory for tpu_custom_call.1']
    #allocation4 [shape = 's32[2]{0}', space=sflag, size = 0x8, scoped, tag = 'scoped memory for tpu_custom_call.1']
    #allocation5 [shape = 'u8[8192]{0}', space=vmem, size = 0x2000, scoped, tag = 'input window, operand 1, single buffered']
    #allocation6 [shape = 's32[1]{0}', space=sflag, size = 0x4, scoped, tag = 'scoped memory for tpu_custom_call.1']
    #allocation7 [shape = 'u8[8192]{0}', space=vmem, size = 0x2000, scoped, tag = 'output window, operand 0']
    %8 = vsyncpa [#allocation3], 0
    %s9 = scalar_lea.sflag [#allocation3], 1
    %10 = vsyncpa %s9, 0
    %11 = vsyncpa [#allocation6], 0
    %12 = vsyncpa [#allocation4], 0
    %s13 = scalar_lea.sflag [#allocation4], 1
    %14 = vsyncpa %s13, 0
    loop: start=0, step=1, limit=4
    $region2: #{tpu_custom_call.1} parent=1 // loop_pre_header
      _
    $region3: #{tpu_custom_call.1} parent=1 // loop_header
      %s16 = sphi 0, %s20
      %p17 = scmp.ge.s32.totalorder %s16, 4
      %s23 = sphi 0, %s35
      %s24 = sphi 0, %s31
      %s25 = sphi 0, %s23
      %s26 = sphi 0, %s24
      %s27 = sphi 0, %s25
      %s28 = sphi 0, %s26
      %s38 = sphi 0, %s40
      %s41 = sphi 0, %s38
      %s42 = sphi 0, %s41
      %s58 = sphi 0, %s42
      %s64 = sphi 0, %s66
      %s67 = sphi 0, %s64
      %s68 = sphi 0, %s67
      %s84 = sphi 0, %s68
      %s90 = sphi 0, %s92
      %s93 = sphi 0, %s90
      %s94 = sphi 0, %s93
      %s110 = sphi 0, %s94
      %s118 = sphi 0, %s120
      %s121 = sphi 0, %s118
      %s122 = sphi 0, %s121
      %s138 = sphi 0, %s122
    $region4: #{tpu_custom_call.1} parent=1 // loop_header_branch
      %19 = sbr.rel (%p17) target = $region8
    $region5: #{tpu_custom_call.1} parent=1 // loop_body
      %s21 = ssub.s32 %s16, 1
      %s22 = ssub.s32 %s16, 2
      %s29 = sadd.s32 1, %s24
      %p30 = scmp.ge.s32.totalorder %s29, 1
      %s31 = scalar_select %p30, 0, %s29
      %s32 = sadd.s32 1, %s23
      %s33 = scalar_select %p30, %s32, %s23
      %p34 = scmp.ge.s32.totalorder %s33, 2
      %s35 = scalar_select %p34, 0, %s33
      %s36 = ssub.s32 %s23, %s35
      %p37 = scmp.eq.s32.totalorder %s36, 0
      %s39 = sadd.s32 %s38, 1
      %s40 = scalar_select %p37, %s38, %s39
      %p43 = pneg %p37
      %p44 = scmp.eq.s32.totalorder %s16, 1
      %p45 = por %p43, %p44
      %p46 = scmp.ne.s32.totalorder %s38, %s41
      %p47 = scmp.eq.s32.totalorder %s16, 0
      %p48 = por %p46, %p47
      %p49 = scmp.ne.s32.totalorder %s38, %s41
      %p50 = scmp.eq.s32.totalorder %s21, 1
      %p51 = por %p49, %p50
      %p52 = scmp.ne.s32.totalorder %s41, %s42
      %p53 = scmp.eq.s32.totalorder %s21, 0
      %p54 = por %p52, %p53
      %p55 = scmp.ne.s32.totalorder %s41, %s42
      %p56 = scmp.eq.s32.totalorder %s22, 1
      %p57 = por %p55, %p56
      %p59 = scmp.ne.s32.totalorder %s42, %s58
      %p60 = scmp.eq.s32.totalorder %s22, 0
      %p61 = por %p59, %p60
      %s62 = ssub.s32 %s24, %s31
      %p63 = scmp.eq.s32.totalorder %s62, 0
      %s65 = sadd.s32 %s64, 1
      %s66 = scalar_select %p63, %s64, %s65
      %p69 = pneg %p63
      %p70 = scmp.eq.s32.totalorder %s16, 1
      %p71 = por %p69, %p70
      %p72 = scmp.ne.s32.totalorder %s64, %s67
      %p73 = scmp.eq.s32.totalorder %s16, 0
      %p74 = por %p72, %p73
      %p75 = scmp.ne.s32.totalorder %s64, %s67
      %p76 = scmp.eq.s32.totalorder %s21, 1
      %p77 = por %p75, %p76
      %p78 = scmp.ne.s32.totalorder %s67, %s68
      %p79 = scmp.eq.s32.totalorder %s21, 0
      %p80 = por %p78, %p79
      %p81 = scmp.ne.s32.totalorder %s67, %s68
      %p82 = scmp.eq.s32.totalorder %s22, 1
      %p83 = por %p81, %p82
      %p85 = scmp.ne.s32.totalorder %s68, %s84
      %p86 = scmp.eq.s32.totalorder %s22, 0
      %p87 = por %p85, %p86
      %s88 = ssub.s32 %s24, %s31
      %p89 = scmp.eq.s32.totalorder %s88, 0
      %s91 = sadd.s32 %s90, 1
      %s92 = scalar_select %p89, %s90, %s91
      %p95 = pneg %p89
      %p96 = scmp.eq.s32.totalorder %s16, 1
      %p97 = por %p95, %p96
      %p98 = scmp.ne.s32.totalorder %s90, %s93
      %p99 = scmp.eq.s32.totalorder %s16, 0
      %p100 = por %p98, %p99
      %p101 = scmp.ne.s32.totalorder %s90, %s93
      %p102 = scmp.eq.s32.totalorder %s21, 1
      %p103 = por %p101, %p102
      %p104 = scmp.ne.s32.totalorder %s93, %s94
      %p105 = scmp.eq.s32.totalorder %s21, 0
      %p106 = por %p104, %p105
      %p107 = scmp.ne.s32.totalorder %s93, %s94
      %p108 = scmp.eq.s32.totalorder %s22, 1
      %p109 = por %p107, %p108
      %p111 = scmp.ne.s32.totalorder %s94, %s110
      %p112 = scmp.eq.s32.totalorder %s22, 0
      %p113 = por %p111, %p112
      %s114 = ssub.s32 %s23, %s35
      %s115 = ssub.s32 %s24, %s31
      %s116 = sor.u32 %s114, %s115
      %p117 = scmp.eq.s32.totalorder %s116, 0
      %s119 = sadd.s32 %s118, 1
      %s120 = scalar_select %p117, %s118, %s119
      %p123 = pneg %p117
      %p124 = scmp.eq.s32.totalorder %s16, 1
      %p125 = por %p123, %p124
      %p126 = scmp.ne.s32.totalorder %s118, %s121
      %p127 = scmp.eq.s32.totalorder %s16, 0
      %p128 = por %p126, %p127
      %p129 = scmp.ne.s32.totalorder %s118, %s121
      %p130 = scmp.eq.s32.totalorder %s21, 1
      %p131 = por %p129, %p130
      %p132 = scmp.ne.s32.totalorder %s121, %s122
      %p133 = scmp.eq.s32.totalorder %s21, 0
      %p134 = por %p132, %p133
      %p135 = scmp.ne.s32.totalorder %s121, %s122
      %p136 = scmp.eq.s32.totalorder %s22, 1
      %p137 = por %p135, %p136
      %p139 = scmp.ne.s32.totalorder %s122, %s138
      %p140 = scmp.eq.s32.totalorder %s22, 0
      %p141 = por %p139, %p140
      %p142 = scmp.le.s32.totalorder 1, %s16
      %p143 = scmp.lt.s32.totalorder %s16, 3
      %p144 = pnand %p142, %p143
      %p145 = pneg %p144
      // Predicated region
      $region9: #{tpu_custom_call.1} parent=5 // pred_check
        _
      $region10: #{tpu_custom_call.1} parent=5 // pred_check_branch
        %147 = sbr.rel (%p144) target = $region12
      $region11: #{tpu_custom_call.1} parent=5 // pred_region
        %s148 = ssub.s32 %s16, 1
        // Predicated region
        $region13: #{tpu_custom_call.1} parent=11 // pred_check
          %p149 = pneg %p80
        $region14: #{tpu_custom_call.1} parent=11 // pred_check_branch
          %151 = sbr.rel (%p149) target = $region16
        $region15: #{tpu_custom_call.1} parent=11 // pred_region
          %s153 = ssub.s32 256, 256
          %154 = vsyncadd [#allocation6], %s153
          %s155 = smul.addr %s26, 4
          %s156 = smul.addr %s155, 64
          %s157 = scalar_lea.hbm %s1, %s156
          %s158 = sshll.u32 [#allocation5], 4
          %s159 = int_to_ptr.vmem [resolvable:$true] %s158
          %164 = dma.hbm_to_vmem [thread:$0]  %s157, 256, %s159, [#allocation6], 64, 64, 4
        $region16: #{tpu_custom_call.1} parent=11 // pred_fallthru
          _
        // Predicated region
        $region17: #{tpu_custom_call.1} parent=11 // pred_check
          %p165 = pneg %p106
        $region18: #{tpu_custom_call.1} parent=11 // pred_check_branch
          %167 = sbr.rel (%p165) target = $region20
        $region19: #{tpu_custom_call.1} parent=11 // pred_region
          %p168 = scmp.lt.s32.totalorder %s26, 0
          %s169 = scalar_select %p168, %s26, 0
          %s170 = scalar_lea.vmem %s2, %s169
        $region20: #{tpu_custom_call.1} parent=11 // pred_fallthru
          _
      $region12: #{tpu_custom_call.1} parent=5 // pred_fallthru
        _
      %p171 = scmp.lt.s32.totalorder %s16, 2
      // Predicated region
      $region21: #{tpu_custom_call.1} parent=5 // pred_check
        %p172 = pneg %p171
      $region22: #{tpu_custom_call.1} parent=5 // pred_check_branch
        %174 = sbr.rel (%p172) target = $region24
      $region23: #{tpu_custom_call.1} parent=5 // pred_region
        // Predicated region
        $region25: #{tpu_custom_call.1} parent=23 // pred_check
          %p175 = pneg %p48
        $region26: #{tpu_custom_call.1} parent=23 // pred_check_branch
          %177 = sbr.rel (%p175) target = $region28
        $region27: #{tpu_custom_call.1} parent=23 // pred_region
          %s178 = sand.u32 %s38, 1
          %s179 = scalar_lea.sflag [#allocation3], %s178
          %s180 = sand.u32 %s38, 1
          %s181 = smul.addr %s180, 8
          %s182 = scalar_lea.vmem [#allocation2], %s181
          %s184 = ssub.s32 128, 128
          %185 = vsyncadd %s179, %s184
          %s186 = smul.addr %s23, 128
          %s187 = scalar_lea.hbm %s0, %s186
          %s189 = sshll.u32 %s182, 4
          %s190 = int_to_ptr.vmem [resolvable:$true] %s189
          %192 = dma.hbm_to_vmem [thread:$0]  %s187, 128, %s190, %s179
        $region28: #{tpu_custom_call.1} parent=23 // pred_fallthru
          _
      $region24: #{tpu_custom_call.1} parent=5 // pred_fallthru
        _
      %p193 = scmp.le.s32.totalorder 1, %s16
      %p194 = scmp.lt.s32.totalorder %s16, 3
      %p195 = pnand %p193, %p194
      %p196 = pneg %p195
      // Predicated region
      $region29: #{tpu_custom_call.1} parent=5 // pred_check
        _
      $region30: #{tpu_custom_call.1} parent=5 // pred_check_branch
        %198 = sbr.rel (%p195) target = $region32
      $region31: #{tpu_custom_call.1} parent=5 // pred_region
        %s199 = ssub.s32 %s16, 1
        %s200 = sand.u32 %s41, 1
        %s201 = scalar_lea.sflag [#allocation3], %s200
        %s202 = sand.u32 %s41, 1
        %s203 = smul.addr %s202, 8
        %s204 = scalar_lea.vmem [#allocation2], %s203
        // Predicated region
        $region33: #{tpu_custom_call.1} parent=31 // pred_check
          %p205 = pneg %p54
        $region34: #{tpu_custom_call.1} parent=31 // pred_check_branch
          %207 = sbr.rel (%p205) target = $region36
        $region35: #{tpu_custom_call.1} parent=31 // pred_region
          %208 = dma.done %s201, 128
        $region36: #{tpu_custom_call.1} parent=31 // pred_fallthru
          _
        // Predicated region
        $region37: #{tpu_custom_call.1} parent=31 // pred_check
          %p209 = pneg %p80
        $region38: #{tpu_custom_call.1} parent=31 // pred_check_branch
          %211 = sbr.rel (%p209) target = $region40
        $region39: #{tpu_custom_call.1} parent=31 // pred_region
          %212 = dma.done [#allocation6], 256
        $region40: #{tpu_custom_call.1} parent=31 // pred_fallthru
          _
        %s213 = sand.u32 %s41, 1
        %s214 = scalar_lea.sflag [#allocation3], %s213
        %s215 = sand.u32 %s41, 1
        %s216 = smul.addr %s215, 8
        %s217 = scalar_lea.vmem [#allocation2], %s216
        %p218 = pneg %p54
        %p219 = pneg %p51
        %p220 = pneg %p80
        %p221 = pneg %p77
        %p222 = scmp.lt.s32.totalorder %s26, 0
        %s223 = scalar_select %p222, %s26, 0
        %s224 = scalar_lea.vmem %s2, %s223
        %p225 = pneg %p106
        %p226 = pneg %p103
        %p227 = pneg %p134
        %p228 = pneg %p131
        %s229 = sand.u32 %s121, 1
        %s230 = scalar_lea.sflag [#allocation4], %s229
        %s231 = sand.u32 %s121, 1
        %s232 = smul.addr %s231, 8
        %s233 = scalar_lea.vmem [#allocation7], %s232
        %p234 = scmp.lt.s32.totalorder %s26, 0
        %s235 = scalar_select %p234, %s26, 0
        %s236 = scalar_lea.vmem %s2, %s235
        %v238 = vld [vmem:[%s204] sm:$0xff]
        %v239 = vpack.c.bf16 %v238, %v238
        %v240 = vld [vmem:[#allocation5] sm:$0xf]
        %v241 = vld [vmem:[#allocation5 + $0x4] sm:$0xf]
        %v242 = vld [vmem:[#allocation5 + $0x8] sm:$0xf]
        %v243 = vld [vmem:[#allocation5 + $0xc] sm:$0xf]
        %v244 = vld [vmem:[%s236] sm:$0x1]
        %v246 = vlaneseq
        %v247 = vshrl.u32 %v246, 7
        %v248 = vsub.s32 0, %v247
        %v249 = vrot.slane %v244, %v248
        %v255 = vunpack.c.l.b16 %v240
        %v256 = vunpack.c.l.b16 %v241
        %v257 = vunpack.c.l.b16 %v242
        %v258 = vunpack.c.l.b16 %v243
        %v259 = vpack.c.b16 %v256, %v255
        %v260 = vpack.c.b16 %v258, %v257
        %vm263 = vcmask 261120
        %v265 = vsel %vm263, %v239, 0
        %267 = vmatprep.subr.bf16.mxu0 0
        %268 = vmatpush1.bf16.msra.mxu0 %v259
        %269 = vmatprep.subr.bf16.mxu0 0
        %270 = vmatpush1.bf16.msra.mxu0 %v260
        %271 = vmatprep.subr.bf16.mxu0 0
        %272 = vmatpush1.bf16.msra.mxu0 0
        %273 = vmatprep.subr.bf16.mxu0 0
        %274 = vmatpush1.bf16.msra.mxu0 0
        %275 = vmatprep.subr.bf16.mxu0 0
        %276 = vmatpush1.bf16.msra.mxu0 0
        %277 = vmatprep.subr.bf16.mxu0 0
        %278 = vmatpush1.bf16.msra.mxu0 0
        %279 = vmatprep.subr.bf16.mxu0 0
        %280 = vmatpush1.bf16.msra.mxu0 0
        %281 = vmatprep.subr.bf16.mxu0 0
        %282 = vmatpush1.bf16.msra.mxu0 0
        %283 = vmatprep.subr.bf16.mxu0 0
        %284 = vmatpush1.bf16.msra.mxu0 0
        %285 = vmatprep.subr.bf16.mxu0 0
        %286 = vmatpush1.bf16.msra.mxu0 0
        %287 = vmatprep.subr.bf16.mxu0 0
        %288 = vmatpush1.bf16.msra.mxu0 0
        %289 = vmatprep.subr.bf16.mxu0 0
        %290 = vmatpush1.bf16.msra.mxu0 0
        %291 = vmatprep.subr.bf16.mxu0 0
        %292 = vmatpush1.bf16.msra.mxu0 0
        %293 = vmatprep.subr.bf16.mxu0 0
        %294 = vmatpush1.bf16.msra.mxu0 0
        %295 = vmatprep.subr.bf16.mxu0 0
        %296 = vmatpush1.bf16.msra.mxu0 0
        %297 = vmatprep.subr.bf16.mxu0 0
        %298 = vmatpush1.bf16.msra.mxu0 0
        %299 = vmatprep.mubr.bf16.mxu0 0
        %300 = vmatmul.mubr.bf16.gmra.mrb[0].mxu0 %v265
        %v301 = vpop.f32.mrb[0].mxu0
        %v302 = vadd.f32 %v249, %v301
        %v303 = vpop.f32.mrb[0].mxu0
        %v304 = vpop.f32.mrb[0].mxu0
        %v305 = vpop.f32.mrb[0].mxu0
        %306 = vdwg.mxu0
        %308 = vrot.lane.b32.xlu0 %v302, 120
        %v309 = vpop.permute.xlu0 %308
        %311 = vrot.lane.b32.xlu0 %v302, 112
        %v312 = vpop.permute.xlu0 %311
        %314 = vrot.lane.b32.xlu0 %v302, 104
        %v315 = vpop.permute.xlu0 %314
        %v317 = vcombine.low %v302, %v312
        %v318 = vcombine.high %v302, %v312
        %v320 = vunpack.c.l.s4 1983009808
        %v321 = vunpack.c.0.s8 %v320
        %v322 = vlaneseq
        %v323 = vshrl.u32 %v322, 7
        %v324 = vsub.s32 %v321, %v323
        %v325 = vrot.slane %v317, %v324
        %v327 = vunpack.c.l.s4 1983009808
        %v328 = vunpack.c.0.s8 %v327
        %v329 = vlaneseq
        %v330 = vshrl.u32 %v329, 7
        %v331 = vsub.s32 %v328, %v330
        %v332 = vrot.slane %v318, %v331
        %v333 = vcombine.low %v309, %v315
        %v334 = vcombine.high %v309, %v315
        %v336 = vunpack.c.l.s4 1983009808
        %v337 = vunpack.c.0.s8 %v336
        %v338 = vlaneseq
        %v339 = vshrl.u32 %v338, 7
        %v340 = vsub.s32 %v337, %v339
        %v341 = vrot.slane %v333, %v340
        %v343 = vunpack.c.l.s4 1983009808
        %v344 = vunpack.c.0.s8 %v343
        %v345 = vlaneseq
        %v346 = vshrl.u32 %v345, 7
        %v347 = vsub.s32 %v344, %v346
        %v348 = vrot.slane %v334, %v347
        %v349 = vcombine.low %v325, %v341
        %v350 = vcombine.high %v325, %v341
        %v352 = vunpack.c.l.s4 1934713408
        %v353 = vunpack.c.0.s8 %v352
        %v354 = vlaneseq
        %v355 = vshrl.u32 %v354, 7
        %v356 = vsub.s32 %v353, %v355
        %v357 = vrot.slane %v349, %v356
        %v359 = vunpack.c.l.s4 1934713408
        %v360 = vunpack.c.0.s8 %v359
        %v361 = vlaneseq
        %v362 = vshrl.u32 %v361, 7
        %v363 = vsub.s32 %v360, %v362
        %v364 = vrot.slane %v350, %v363
        %v365 = vcombine.low %v332, %v348
        %v366 = vcombine.high %v332, %v348
        %v368 = vunpack.c.l.s4 1934713408
        %v369 = vunpack.c.0.s8 %v368
        %v370 = vlaneseq
        %v371 = vshrl.u32 %v370, 7
        %v372 = vsub.s32 %v369, %v371
        %v373 = vrot.slane %v365, %v372
        %v375 = vunpack.c.l.s4 1934713408
        %v376 = vunpack.c.0.s8 %v375
        %v377 = vlaneseq
        %v378 = vshrl.u32 %v377, 7
        %v379 = vsub.s32 %v376, %v378
        %v380 = vrot.slane %v366, %v379
        %v381 = vcombine.high %v357, 0.0
        %v382 = vcombine.high %v364, 0.0
        %v383 = vcombine.high %v373, 0.0
        %v384 = vcombine.high %v380, 0.0
        %v385 = vpack.c.bf16 %v357, %v357
        %v386 = vpack.c.bf16 %v381, %v381
        %v387 = vpack.c.bf16 %v364, %v364
        %v388 = vpack.c.bf16 %v382, %v382
        %v389 = vpack.c.bf16 %v373, %v373
        %v390 = vpack.c.bf16 %v383, %v383
        %v391 = vpack.c.bf16 %v380, %v380
        %v392 = vpack.c.bf16 %v384, %v384
        %393 = vrot.lane.b32.xlu0 %v302, 96
        %v394 = vpop.permute.xlu0 %393
        %395 = vrot.lane.b32.xlu0 %v309, 96
        %v396 = vpop.permute.xlu0 %395
        %397 = vrot.lane.b32.xlu0 %v312, 96
        %v398 = vpop.permute.xlu0 %397
        %399 = vrot.lane.b32.xlu0 %v315, 96
        %v400 = vpop.permute.xlu0 %399
        %v405 = vcombine.low %v394, %v398
        %v406 = vcombine.high %v394, %v398
        %v408 = vunpack.c.l.s4 1983009808
        %v409 = vunpack.c.0.s8 %v408
        %v410 = vlaneseq
        %v411 = vshrl.u32 %v410, 7
        %v412 = vsub.s32 %v409, %v411
        %v413 = vrot.slane %v405, %v412
        %v415 = vunpack.c.l.s4 1983009808
        %v416 = vunpack.c.0.s8 %v415
        %v417 = vlaneseq
        %v418 = vshrl.u32 %v417, 7
        %v419 = vsub.s32 %v416, %v418
        %v420 = vrot.slane %v406, %v419
        %v421 = vcombine.low %v396, %v400
        %v422 = vcombine.high %v396, %v400
        %v424 = vunpack.c.l.s4 1983009808
        %v425 = vunpack.c.0.s8 %v424
        %v426 = vlaneseq
        %v427 = vshrl.u32 %v426, 7
        %v428 = vsub.s32 %v425, %v427
        %v429 = vrot.slane %v421, %v428
        %v431 = vunpack.c.l.s4 1983009808
        %v432 = vunpack.c.0.s8 %v431
        %v433 = vlaneseq
        %v434 = vshrl.u32 %v433, 7
        %v435 = vsub.s32 %v432, %v434
        %v436 = vrot.slane %v422, %v435
        %v437 = vcombine.low %v413, %v429
        %v438 = vcombine.high %v413, %v429
        %v440 = vunpack.c.l.s4 1934713408
        %v441 = vunpack.c.0.s8 %v440
        %v442 = vlaneseq
        %v443 = vshrl.u32 %v442, 7
        %v444 = vsub.s32 %v441, %v443
        %v445 = vrot.slane %v437, %v444
        %v447 = vunpack.c.l.s4 1934713408
        %v448 = vunpack.c.0.s8 %v447
        %v449 = vlaneseq
        %v450 = vshrl.u32 %v449, 7
        %v451 = vsub.s32 %v448, %v450
        %v452 = vrot.slane %v438, %v451
        %v453 = vcombine.low %v420, %v436
        %v454 = vcombine.high %v420, %v436
        %v456 = vunpack.c.l.s4 1934713408
        %v457 = vunpack.c.0.s8 %v456
        %v458 = vlaneseq
        %v459 = vshrl.u32 %v458, 7
        %v460 = vsub.s32 %v457, %v459
        %v461 = vrot.slane %v453, %v460
        %v463 = vunpack.c.l.s4 1934713408
        %v464 = vunpack.c.0.s8 %v463
        %v465 = vlaneseq
        %v466 = vshrl.u32 %v465, 7
        %v467 = vsub.s32 %v464, %v466
        %v468 = vrot.slane %v454, %v467
        %v469 = vcombine.high %v445, 0.0
        %v470 = vcombine.high %v452, 0.0
        %v471 = vcombine.high %v461, 0.0
        %v472 = vcombine.high %v468, 0.0
        %v473 = vpack.c.bf16 %v445, %v445
        %v474 = vpack.c.bf16 %v469, %v469
        %v475 = vpack.c.bf16 %v452, %v452
        %v476 = vpack.c.bf16 %v470, %v470
        %v477 = vpack.c.bf16 %v461, %v461
        %v478 = vpack.c.bf16 %v471, %v471
        %v479 = vpack.c.bf16 %v468, %v468
        %v480 = vpack.c.bf16 %v472, %v472
        %481 = vrot.lane.b32.xlu0 %v302, 64
        %v482 = vpop.permute.xlu0 %481
        %483 = vrot.lane.b32.xlu0 %v309, 64
        %v484 = vpop.permute.xlu0 %483
        %485 = vrot.lane.b32.xlu0 %v312, 64
        %v486 = vpop.permute.xlu0 %485
        %487 = vrot.lane.b32.xlu0 %v315, 64
        %v488 = vpop.permute.xlu0 %487
        %v493 = vcombine.low %v482, %v486
        %v494 = vcombine.high %v482, %v486
        %v496 = vunpack.c.l.s4 1983009808
        %v497 = vunpack.c.0.s8 %v496
        %v498 = vlaneseq
        %v499 = vshrl.u32 %v498, 7
        %v500 = vsub.s32 %v497, %v499
        %v501 = vrot.slane %v493, %v500
        %v503 = vunpack.c.l.s4 1983009808
        %v504 = vunpack.c.0.s8 %v503
        %v505 = vlaneseq
        %v506 = vshrl.u32 %v505, 7
        %v507 = vsub.s32 %v504, %v506
        %v508 = vrot.slane %v494, %v507
        %v509 = vcombine.low %v484, %v488
        %v510 = vcombine.high %v484, %v488
        %v512 = vunpack.c.l.s4 1983009808
        %v513 = vunpack.c.0.s8 %v512
        %v514 = vlaneseq
        %v515 = vshrl.u32 %v514, 7
        %v516 = vsub.s32 %v513, %v515
        %v517 = vrot.slane %v509, %v516
        %v519 = vunpack.c.l.s4 1983009808
        %v520 = vunpack.c.0.s8 %v519
        %v521 = vlaneseq
        %v522 = vshrl.u32 %v521, 7
        %v523 = vsub.s32 %v520, %v522
        %v524 = vrot.slane %v510, %v523
        %v525 = vcombine.low %v501, %v517
        %v526 = vcombine.high %v501, %v517
        %v528 = vunpack.c.l.s4 1934713408
        %v529 = vunpack.c.0.s8 %v528
        %v530 = vlaneseq
        %v531 = vshrl.u32 %v530, 7
        %v532 = vsub.s32 %v529, %v531
        %v533 = vrot.slane %v525, %v532
        %v535 = vunpack.c.l.s4 1934713408
        %v536 = vunpack.c.0.s8 %v535
        %v537 = vlaneseq
        %v538 = vshrl.u32 %v537, 7
        %v539 = vsub.s32 %v536, %v538
        %v540 = vrot.slane %v526, %v539
        %v541 = vcombine.low %v508, %v524
        %v542 = vcombine.high %v508, %v524
        %v544 = vunpack.c.l.s4 1934713408
        %v545 = vunpack.c.0.s8 %v544
        %v546 = vlaneseq
        %v547 = vshrl.u32 %v546, 7
        %v548 = vsub.s32 %v545, %v547
        %v549 = vrot.slane %v541, %v548
        %v551 = vunpack.c.l.s4 1934713408
        %v552 = vunpack.c.0.s8 %v551
        %v553 = vlaneseq
        %v554 = vshrl.u32 %v553, 7
        %v555 = vsub.s32 %v552, %v554
        %v556 = vrot.slane %v542, %v555
        %v557 = vcombine.high %v533, 0.0
        %v558 = vcombine.high %v540, 0.0
        %v559 = vcombine.high %v549, 0.0
        %v560 = vcombine.high %v556, 0.0
        %v561 = vpack.c.bf16 %v533, %v533
        %v562 = vpack.c.bf16 %v557, %v557
        %v563 = vpack.c.bf16 %v540, %v540
        %v564 = vpack.c.bf16 %v558, %v558
        %v565 = vpack.c.bf16 %v549, %v549
        %v566 = vpack.c.bf16 %v559, %v559
        %v567 = vpack.c.bf16 %v556, %v556
        %v568 = vpack.c.bf16 %v560, %v560
        %v569 = vcombine.low %v385, %v389
        %v571 = vunpack.c.l.s4 1983009808
        %v572 = vunpack.c.0.s8 %v571
        %v573 = vlaneseq
        %v574 = vshrl.u32 %v573, 7
        %v575 = vsub.s32 %v572, %v574
        %v576 = vrot.slane %v569, %v575
        %v577 = vcombine.low %v387, %v391
        %v579 = vunpack.c.l.s4 1983009808
        %v580 = vunpack.c.0.s8 %v579
        %v581 = vlaneseq
        %v582 = vshrl.u32 %v581, 7
        %v583 = vsub.s32 %v580, %v582
        %v584 = vrot.slane %v577, %v583
        %v585 = vcombine.low %v576, %v584
        %v587 = vunpack.c.l.s4 1934713408
        %v588 = vunpack.c.0.s8 %v587
        %v589 = vlaneseq
        %v590 = vshrl.u32 %v589, 7
        %v591 = vsub.s32 %v588, %v590
        %v592 = vrot.slane %v585, %v591
        %v593 = vcombine.high %v592, 0
        %v594 = vcombine.low %v386, %v390
        %v596 = vunpack.c.l.s4 1983009808
        %v597 = vunpack.c.0.s8 %v596
        %v598 = vlaneseq
        %v599 = vshrl.u32 %v598, 7
        %v600 = vsub.s32 %v597, %v599
        %v601 = vrot.slane %v594, %v600
        %v602 = vcombine.low %v388, %v392
        %v604 = vunpack.c.l.s4 1983009808
        %v605 = vunpack.c.0.s8 %v604
        %v606 = vlaneseq
        %v607 = vshrl.u32 %v606, 7
        %v608 = vsub.s32 %v605, %v607
        %v609 = vrot.slane %v602, %v608
        %v610 = vcombine.low %v601, %v609
        %v612 = vunpack.c.l.s4 1934713408
        %v613 = vunpack.c.0.s8 %v612
        %v614 = vlaneseq
        %v615 = vshrl.u32 %v614, 7
        %v616 = vsub.s32 %v613, %v615
        %v617 = vrot.slane %v610, %v616
        %v618 = vcombine.high %v617, 0
        %v621 = vpack.i.b16 %v617, %v592
        %v622 = vshrl.u32 %v592, 16
        %v623 = vshrl.u32 %v617, 16
        %v624 = vpack.i.b16 %v623, %v622
        %v627 = vpack.i.b16 %v618, %v593
        %v628 = vshrl.u32 %v593, 16
        %v629 = vshrl.u32 %v618, 16
        %v630 = vpack.i.b16 %v629, %v628
        %631 = vxpose.xlu0.c.b16.start [1/8] %v473, 128
        %632 = vxpose.xlu0.c.b16.cont [2/8] 0, 128
        %633 = vxpose.xlu0.c.b16.cont [3/8] 0, 128
        %634 = vxpose.xlu0.c.b16.cont [4/8] 0, 128
        %635 = vxpose.xlu0.c.b16.cont [5/8] 0, 128
        %636 = vxpose.xlu0.c.b16.cont [6/8] 0, 128
        %637 = vxpose.xlu0.c.b16.cont [7/8] 0, 128
        %638 = vxpose.xlu0.c.b16.end [8/8] 0, 128
        %v639 = vpop.trf.xlu0
        %v640 = vpop.trf.xlu0
        %v641 = vpop.trf.xlu0
        %v642 = vpop.trf.xlu0
        %v643 = vpop.trf.xlu0
        %v644 = vpop.trf.xlu0
        %v645 = vpop.trf.xlu0
        %v646 = vpop.trf.xlu0
        %647 = vxpose.xlu0.c.b16.start [1/8] %v474, 128
        %648 = vxpose.xlu0.c.b16.cont [2/8] 0, 128
        %649 = vxpose.xlu0.c.b16.cont [3/8] 0, 128
        %650 = vxpose.xlu0.c.b16.cont [4/8] 0, 128
        %651 = vxpose.xlu0.c.b16.cont [5/8] 0, 128
        %652 = vxpose.xlu0.c.b16.cont [6/8] 0, 128
        %653 = vxpose.xlu0.c.b16.cont [7/8] 0, 128
        %654 = vxpose.xlu0.c.b16.end [8/8] 0, 128
        %v655 = vpop.trf.xlu0
        %v656 = vpop.trf.xlu0
        %v657 = vpop.trf.xlu0
        %v658 = vpop.trf.xlu0
        %v659 = vpop.trf.xlu0
        %v660 = vpop.trf.xlu0
        %v661 = vpop.trf.xlu0
        %v662 = vpop.trf.xlu0
        %663 = vxpose.xlu0.c.b16.start [1/8] %v475, 128
        %664 = vxpose.xlu0.c.b16.cont [2/8] 0, 128
        %665 = vxpose.xlu0.c.b16.cont [3/8] 0, 128
        %666 = vxpose.xlu0.c.b16.cont [4/8] 0, 128
        %667 = vxpose.xlu0.c.b16.cont [5/8] 0, 128
        %668 = vxpose.xlu0.c.b16.cont [6/8] 0, 128
        %669 = vxpose.xlu0.c.b16.cont [7/8] 0, 128
        %670 = vxpose.xlu0.c.b16.end [8/8] 0, 128
        %v671 = vpop.trf.xlu0
        %v672 = vpop.trf.xlu0
        %v673 = vpop.trf.xlu0
        %v674 = vpop.trf.xlu0
        %v675 = vpop.trf.xlu0
        %v676 = vpop.trf.xlu0
        %v677 = vpop.trf.xlu0
        %v678 = vpop.trf.xlu0
        %679 = vxpose.xlu0.c.b16.start [1/8] %v476, 128
        %680 = vxpose.xlu0.c.b16.cont [2/8] 0, 128
        %681 = vxpose.xlu0.c.b16.cont [3/8] 0, 128
        %682 = vxpose.xlu0.c.b16.cont [4/8] 0, 128
        %683 = vxpose.xlu0.c.b16.cont [5/8] 0, 128
        %684 = vxpose.xlu0.c.b16.cont [6/8] 0, 128
        %685 = vxpose.xlu0.c.b16.cont [7/8] 0, 128
        %686 = vxpose.xlu0.c.b16.end [8/8] 0, 128
        %v687 = vpop.trf.xlu0
        %v688 = vpop.trf.xlu0
        %v689 = vpop.trf.xlu0
        %v690 = vpop.trf.xlu0
        %v691 = vpop.trf.xlu0
        %v692 = vpop.trf.xlu0
        %v693 = vpop.trf.xlu0
        %v694 = vpop.trf.xlu0
        %695 = vxpose.xlu0.c.b16.start [1/8] %v477, 128
        %696 = vxpose.xlu0.c.b16.cont [2/8] 0, 128
        %697 = vxpose.xlu0.c.b16.cont [3/8] 0, 128
        %698 = vxpose.xlu0.c.b16.cont [4/8] 0, 128
        %699 = vxpose.xlu0.c.b16.cont [5/8] 0, 128
        %700 = vxpose.xlu0.c.b16.cont [6/8] 0, 128
        %701 = vxpose.xlu0.c.b16.cont [7/8] 0, 128
        %702 = vxpose.xlu0.c.b16.end [8/8] 0, 128
        %v703 = vpop.trf.xlu0
        %v704 = vpop.trf.xlu0
        %v705 = vpop.trf.xlu0
        %v706 = vpop.trf.xlu0
        %v707 = vpop.trf.xlu0
        %v708 = vpop.trf.xlu0
        %v709 = vpop.trf.xlu0
        %v710 = vpop.trf.xlu0
        %711 = vxpose.xlu0.c.b16.start [1/8] %v478, 128
        %712 = vxpose.xlu0.c.b16.cont [2/8] 0, 128
        %713 = vxpose.xlu0.c.b16.cont [3/8] 0, 128
        %714 = vxpose.xlu0.c.b16.cont [4/8] 0, 128
        %715 = vxpose.xlu0.c.b16.cont [5/8] 0, 128
        %716 = vxpose.xlu0.c.b16.cont [6/8] 0, 128
        %717 = vxpose.xlu0.c.b16.cont [7/8] 0, 128
        %718 = vxpose.xlu0.c.b16.end [8/8] 0, 128
        %v719 = vpop.trf.xlu0
        %v720 = vpop.trf.xlu0
        %v721 = vpop.trf.xlu0
        %v722 = vpop.trf.xlu0
        %v723 = vpop.trf.xlu0
        %v724 = vpop.trf.xlu0
        %v725 = vpop.trf.xlu0
        %v726 = vpop.trf.xlu0
        %727 = vxpose.xlu0.c.b16.start [1/8] %v479, 128
        %728 = vxpose.xlu0.c.b16.cont [2/8] 0, 128
        %729 = vxpose.xlu0.c.b16.cont [3/8] 0, 128
        %730 = vxpose.xlu0.c.b16.cont [4/8] 0, 128
        %731 = vxpose.xlu0.c.b16.cont [5/8] 0, 128
        %732 = vxpose.xlu0.c.b16.cont [6/8] 0, 128
        %733 = vxpose.xlu0.c.b16.cont [7/8] 0, 128
        %734 = vxpose.xlu0.c.b16.end [8/8] 0, 128
        %v735 = vpop.trf.xlu0
        %v736 = vpop.trf.xlu0
        %v737 = vpop.trf.xlu0
        %v738 = vpop.trf.xlu0
        %v739 = vpop.trf.xlu0
        %v740 = vpop.trf.xlu0
        %v741 = vpop.trf.xlu0
        %v742 = vpop.trf.xlu0
        %743 = vxpose.xlu0.c.b16.start [1/8] %v480, 128
        %744 = vxpose.xlu0.c.b16.cont [2/8] 0, 128
        %745 = vxpose.xlu0.c.b16.cont [3/8] 0, 128
        %746 = vxpose.xlu0.c.b16.cont [4/8] 0, 128
        %747 = vxpose.xlu0.c.b16.cont [5/8] 0, 128
        %748 = vxpose.xlu0.c.b16.cont [6/8] 0, 128
        %749 = vxpose.xlu0.c.b16.cont [7/8] 0, 128
        %750 = vxpose.xlu0.c.b16.end [8/8] 0, 128
        %v751 = vpop.trf.xlu0
        %v752 = vpop.trf.xlu0
        %v753 = vpop.trf.xlu0
        %v754 = vpop.trf.xlu0
        %v755 = vpop.trf.xlu0
        %v756 = vpop.trf.xlu0
        %v757 = vpop.trf.xlu0
        %v758 = vpop.trf.xlu0
        %v759 = vcombine.low %v639, %v703
        %v761 = vunpack.c.l.s4 1983009808
        %v762 = vunpack.c.0.s8 %v761
        %v763 = vlaneseq
        %v764 = vshrl.u32 %v763, 7
        %v765 = vsub.s32 %v762, %v764
        %v766 = vrot.slane %v759, %v765
        %v767 = vcombine.low %v671, %v735
        %v769 = vunpack.c.l.s4 1983009808
        %v770 = vunpack.c.0.s8 %v769
        %v771 = vlaneseq
        %v772 = vshrl.u32 %v771, 7
        %v773 = vsub.s32 %v770, %v772
        %v774 = vrot.slane %v767, %v773
        %v775 = vcombine.low %v766, %v774
        %v776 = vcombine.high %v766, %v774
        %v778 = vunpack.c.l.s4 1934713408
        %v779 = vunpack.c.0.s8 %v778
        %v780 = vlaneseq
        %v781 = vshrl.u32 %v780, 7
        %v782 = vsub.s32 %v779, %v781
        %v783 = vrot.slane %v775, %v782
        %v785 = vunpack.c.l.s4 1934713408
        %v786 = vunpack.c.0.s8 %v785
        %v787 = vlaneseq
        %v788 = vshrl.u32 %v787, 7
        %v789 = vsub.s32 %v786, %v788
        %v790 = vrot.slane %v776, %v789
        %v791 = vcombine.high %v783, 0
        %v792 = vcombine.high %v790, 0
        %v793 = vcombine.low %v655, %v719
        %v795 = vunpack.c.l.s4 1983009808
        %v796 = vunpack.c.0.s8 %v795
        %v797 = vlaneseq
        %v798 = vshrl.u32 %v797, 7
        %v799 = vsub.s32 %v796, %v798
        %v800 = vrot.slane %v793, %v799
        %v801 = vcombine.low %v687, %v751
        %v803 = vunpack.c.l.s4 1983009808
        %v804 = vunpack.c.0.s8 %v803
        %v805 = vlaneseq
        %v806 = vshrl.u32 %v805, 7
        %v807 = vsub.s32 %v804, %v806
        %v808 = vrot.slane %v801, %v807
        %v809 = vcombine.low %v800, %v808
        %v810 = vcombine.high %v800, %v808
        %v812 = vunpack.c.l.s4 1934713408
        %v813 = vunpack.c.0.s8 %v812
        %v814 = vlaneseq
        %v815 = vshrl.u32 %v814, 7
        %v816 = vsub.s32 %v813, %v815
        %v817 = vrot.slane %v809, %v816
        %v819 = vunpack.c.l.s4 1934713408
        %v820 = vunpack.c.0.s8 %v819
        %v821 = vlaneseq
        %v822 = vshrl.u32 %v821, 7
        %v823 = vsub.s32 %v820, %v822
        %v824 = vrot.slane %v810, %v823
        %v825 = vcombine.high %v817, 0
        %v826 = vcombine.high %v824, 0
        %v829 = vpack.i.b16 %v817, %v783
        %v831 = vshrl.u32 %v783, 16
        %v832 = vshrl.u32 %v817, 16
        %v833 = vpack.i.b16 %v832, %v831
        %v837 = vpack.i.b16 %v825, %v791
        %v839 = vshrl.u32 %v791, 16
        %v840 = vshrl.u32 %v825, 16
        %v841 = vpack.i.b16 %v840, %v839
        %v845 = vpack.i.b16 %v824, %v790
        %v847 = vshrl.u32 %v790, 16
        %v848 = vshrl.u32 %v824, 16
        %v849 = vpack.i.b16 %v848, %v847
        %v853 = vpack.i.b16 %v826, %v792
        %v855 = vshrl.u32 %v792, 16
        %v856 = vshrl.u32 %v826, 16
        %v857 = vpack.i.b16 %v856, %v855
        %859 = vxpose.xlu0.c.b16.start [1/8] %v829, 128
        %860 = vxpose.xlu0.c.b16.cont [2/8] 0, 128
        %861 = vxpose.xlu0.c.b16.cont [3/8] 0, 128
        %862 = vxpose.xlu0.c.b16.cont [4/8] 0, 128
        %863 = vxpose.xlu0.c.b16.cont [5/8] 0, 128
        %864 = vxpose.xlu0.c.b16.cont [6/8] 0, 128
        %865 = vxpose.xlu0.c.b16.cont [7/8] 0, 128
        %866 = vxpose.xlu0.c.b16.end [8/8] 0, 128
        %v867 = vpop.trf.xlu0
        %v868 = vpop.trf.xlu0
        %v869 = vpop.trf.xlu0
        %v870 = vpop.trf.xlu0
        %v871 = vpop.trf.xlu0
        %v872 = vpop.trf.xlu0
        %v873 = vpop.trf.xlu0
        %v874 = vpop.trf.xlu0
        %875 = vxpose.xlu0.c.b16.start [1/8] %v833, 128
        %876 = vxpose.xlu0.c.b16.cont [2/8] 0, 128
        %877 = vxpose.xlu0.c.b16.cont [3/8] 0, 128
        %878 = vxpose.xlu0.c.b16.cont [4/8] 0, 128
        %879 = vxpose.xlu0.c.b16.cont [5/8] 0, 128
        %880 = vxpose.xlu0.c.b16.cont [6/8] 0, 128
        %881 = vxpose.xlu0.c.b16.cont [7/8] 0, 128
        %882 = vxpose.xlu0.c.b16.end [8/8] 0, 128
        %v883 = vpop.trf.xlu0
        %v884 = vpop.trf.xlu0
        %v885 = vpop.trf.xlu0
        %v886 = vpop.trf.xlu0
        %v887 = vpop.trf.xlu0
        %v888 = vpop.trf.xlu0
        %v889 = vpop.trf.xlu0
        %v890 = vpop.trf.xlu0
        %891 = vxpose.xlu0.c.b16.start [1/8] %v837, 128
        %892 = vxpose.xlu0.c.b16.cont [2/8] 0, 128
        %893 = vxpose.xlu0.c.b16.cont [3/8] 0, 128
        %894 = vxpose.xlu0.c.b16.cont [4/8] 0, 128
        %895 = vxpose.xlu0.c.b16.cont [5/8] 0, 128
        %896 = vxpose.xlu0.c.b16.cont [6/8] 0, 128
        %897 = vxpose.xlu0.c.b16.cont [7/8] 0, 128
        %898 = vxpose.xlu0.c.b16.end [8/8] 0, 128
        %v899 = vpop.trf.xlu0
        %v900 = vpop.trf.xlu0
        %v901 = vpop.trf.xlu0
        %v902 = vpop.trf.xlu0
        %v903 = vpop.trf.xlu0
        %v904 = vpop.trf.xlu0
        %v905 = vpop.trf.xlu0
        %v906 = vpop.trf.xlu0
        %907 = vxpose.xlu0.c.b16.start [1/8] %v841, 128
        %908 = vxpose.xlu0.c.b16.cont [2/8] 0, 128
        %909 = vxpose.xlu0.c.b16.cont [3/8] 0, 128
        %910 = vxpose.xlu0.c.b16.cont [4/8] 0, 128
        %911 = vxpose.xlu0.c.b16.cont [5/8] 0, 128
        %912 = vxpose.xlu0.c.b16.cont [6/8] 0, 128
        %913 = vxpose.xlu0.c.b16.cont [7/8] 0, 128
        %914 = vxpose.xlu0.c.b16.end [8/8] 0, 128
        %v915 = vpop.trf.xlu0
        %v916 = vpop.trf.xlu0
        %v917 = vpop.trf.xlu0
        %v918 = vpop.trf.xlu0
        %v919 = vpop.trf.xlu0
        %v920 = vpop.trf.xlu0
        %v921 = vpop.trf.xlu0
        %v922 = vpop.trf.xlu0
        %923 = vxpose.xlu0.c.b16.start [1/8] %v845, 128
        %924 = vxpose.xlu0.c.b16.cont [2/8] 0, 128
        %925 = vxpose.xlu0.c.b16.cont [3/8] 0, 128
        %926 = vxpose.xlu0.c.b16.cont [4/8] 0, 128
        %927 = vxpose.xlu0.c.b16.cont [5/8] 0, 128
        %928 = vxpose.xlu0.c.b16.cont [6/8] 0, 128
        %929 = vxpose.xlu0.c.b16.cont [7/8] 0, 128
        %930 = vxpose.xlu0.c.b16.end [8/8] 0, 128
        %v931 = vpop.trf.xlu0
        %v932 = vpop.trf.xlu0
        %v933 = vpop.trf.xlu0
        %v934 = vpop.trf.xlu0
        %v935 = vpop.trf.xlu0
        %v936 = vpop.trf.xlu0
        %v937 = vpop.trf.xlu0
        %v938 = vpop.trf.xlu0
        %939 = vxpose.xlu0.c.b16.start [1/8] %v849, 128
        %940 = vxpose.xlu0.c.b16.cont [2/8] 0, 128
        %941 = vxpose.xlu0.c.b16.cont [3/8] 0, 128
        %942 = vxpose.xlu0.c.b16.cont [4/8] 0, 128
        %943 = vxpose.xlu0.c.b16.cont [5/8] 0, 128
        %944 = vxpose.xlu0.c.b16.cont [6/8] 0, 128
        %945 = vxpose.xlu0.c.b16.cont [7/8] 0, 128
        %946 = vxpose.xlu0.c.b16.end [8/8] 0, 128
        %v947 = vpop.trf.xlu0
        %v948 = vpop.trf.xlu0
        %v949 = vpop.trf.xlu0
        %v950 = vpop.trf.xlu0
        %v951 = vpop.trf.xlu0
        %v952 = vpop.trf.xlu0
        %v953 = vpop.trf.xlu0
        %v954 = vpop.trf.xlu0
        %955 = vxpose.xlu0.c.b16.start [1/8] %v853, 128
        %956 = vxpose.xlu0.c.b16.cont [2/8] 0, 128
        %957 = vxpose.xlu0.c.b16.cont [3/8] 0, 128
        %958 = vxpose.xlu0.c.b16.cont [4/8] 0, 128
        %959 = vxpose.xlu0.c.b16.cont [5/8] 0, 128
        %960 = vxpose.xlu0.c.b16.cont [6/8] 0, 128
        %961 = vxpose.xlu0.c.b16.cont [7/8] 0, 128
        %962 = vxpose.xlu0.c.b16.end [8/8] 0, 128
        %v963 = vpop.trf.xlu0
        %v964 = vpop.trf.xlu0
        %v965 = vpop.trf.xlu0
        %v966 = vpop.trf.xlu0
        %v967 = vpop.trf.xlu0
        %v968 = vpop.trf.xlu0
        %v969 = vpop.trf.xlu0
        %v970 = vpop.trf.xlu0
        %971 = vxpose.xlu0.c.b16.start [1/8] %v857, 128
        %972 = vxpose.xlu0.c.b16.cont [2/8] 0, 128
        %973 = vxpose.xlu0.c.b16.cont [3/8] 0, 128
        %974 = vxpose.xlu0.c.b16.cont [4/8] 0, 128
        %975 = vxpose.xlu0.c.b16.cont [5/8] 0, 128
        %976 = vxpose.xlu0.c.b16.cont [6/8] 0, 128
        %977 = vxpose.xlu0.c.b16.cont [7/8] 0, 128
        %978 = vxpose.xlu0.c.b16.end [8/8] 0, 128
        %v979 = vpop.trf.xlu0
        %v980 = vpop.trf.xlu0
        %v981 = vpop.trf.xlu0
        %v982 = vpop.trf.xlu0
        %v983 = vpop.trf.xlu0
        %v984 = vpop.trf.xlu0
        %v985 = vpop.trf.xlu0
        %v986 = vpop.trf.xlu0
        %v987 = vcombine.low %v867, %v931
        %v989 = vunpack.c.l.s4 1983009808
        %v990 = vunpack.c.0.s8 %v989
        %v991 = vlaneseq
        %v992 = vshrl.u32 %v991, 7
        %v993 = vsub.s32 %v990, %v992
        %v994 = vrot.slane %v987, %v993
        %v995 = vcombine.low %v899, %v963
        %v997 = vunpack.c.l.s4 1983009808
        %v998 = vunpack.c.0.s8 %v997
        %v999 = vlaneseq
        %v1000 = vshrl.u32 %v999, 7
        %v1001 = vsub.s32 %v998, %v1000
        %v1002 = vrot.slane %v995, %v1001
        %v1003 = vcombine.low %v994, %v1002
        %v1005 = vunpack.c.l.s4 1934713408
        %v1006 = vunpack.c.0.s8 %v1005
        %v1007 = vlaneseq
        %v1008 = vshrl.u32 %v1007, 7
        %v1009 = vsub.s32 %v1006, %v1008
        %v1010 = vrot.slane %v1003, %v1009
        %v1011 = vcombine.high %v1010, 0
        %v1012 = vcombine.low %v883, %v947
        %v1014 = vunpack.c.l.s4 1983009808
        %v1015 = vunpack.c.0.s8 %v1014
        %v1016 = vlaneseq
        %v1017 = vshrl.u32 %v1016, 7
        %v1018 = vsub.s32 %v1015, %v1017
        %v1019 = vrot.slane %v1012, %v1018
        %v1020 = vcombine.low %v915, %v979
        %v1022 = vunpack.c.l.s4 1983009808
        %v1023 = vunpack.c.0.s8 %v1022
        %v1024 = vlaneseq
        %v1025 = vshrl.u32 %v1024, 7
        %v1026 = vsub.s32 %v1023, %v1025
        %v1027 = vrot.slane %v1020, %v1026
        %v1028 = vcombine.low %v1019, %v1027
        %v1030 = vunpack.c.l.s4 1934713408
        %v1031 = vunpack.c.0.s8 %v1030
        %v1032 = vlaneseq
        %v1033 = vshrl.u32 %v1032, 7
        %v1034 = vsub.s32 %v1031, %v1033
        %v1035 = vrot.slane %v1028, %v1034
        %v1036 = vcombine.high %v1035, 0
        %v1039 = vpack.i.b16 %v1035, %v1010
        %v1040 = vshrl.u32 %v1010, 16
        %v1041 = vshrl.u32 %v1035, 16
        %v1042 = vpack.i.b16 %v1041, %v1040
        %v1045 = vpack.i.b16 %v1036, %v1011
        %v1046 = vshrl.u32 %v1011, 16
        %v1047 = vshrl.u32 %v1036, 16
        %v1048 = vpack.i.b16 %v1047, %v1046
        %vm1049 = vcmask 64512
        %v1051 = vsel %vm1049, %v621, 0
        %vm1053 = vcmask 1043456
        %v1055 = vsel %vm1053, %v1039, 0
        %1057 = vmatprep.subr.bf16.mxu0 0
        %1058 = vmatpush1.bf16.msra.mxu0 %v1055
        %1059 = vmatprep.subr.bf16.mxu0 0
        %1060 = vmatpush1.bf16.msra.mxu0 0
        %1061 = vmatprep.subr.bf16.mxu0 0
        %1062 = vmatpush1.bf16.msra.mxu0 0
        %1063 = vmatprep.subr.bf16.mxu0 0
        %1064 = vmatpush1.bf16.msra.mxu0 0
        %1065 = vmatprep.subr.bf16.mxu0 0
        %1066 = vmatpush1.bf16.msra.mxu0 0
        %1067 = vmatprep.subr.bf16.mxu0 0
        %1068 = vmatpush1.bf16.msra.mxu0 0
        %1069 = vmatprep.subr.bf16.mxu0 0
        %1070 = vmatpush1.bf16.msra.mxu0 0
        %1071 = vmatprep.subr.bf16.mxu0 0
        %1072 = vmatpush1.bf16.msra.mxu0 0
        %1073 = vmatprep.subr.bf16.mxu0 0
        %1074 = vmatpush1.bf16.msra.mxu0 0
        %1075 = vmatprep.subr.bf16.mxu0 0
        %1076 = vmatpush1.bf16.msra.mxu0 0
        %1077 = vmatprep.subr.bf16.mxu0 0
        %1078 = vmatpush1.bf16.msra.mxu0 0
        %1079 = vmatprep.subr.bf16.mxu0 0
        %1080 = vmatpush1.bf16.msra.mxu0 0
        %1081 = vmatprep.subr.bf16.mxu0 0
        %1082 = vmatpush1.bf16.msra.mxu0 0
        %1083 = vmatprep.subr.bf16.mxu0 0
        %1084 = vmatpush1.bf16.msra.mxu0 0
        %1085 = vmatprep.subr.bf16.mxu0 0
        %1086 = vmatpush1.bf16.msra.mxu0 0
        %1087 = vmatprep.subr.bf16.mxu0 0
        %1088 = vmatpush1.bf16.msra.mxu0 0
        %1089 = vmatprep.mubr.bf16.mxu0 0
        %1090 = vmatmul.mubr.bf16.gmra.mrb[0].mxu0 %v1051
        %v1091 = vpop.f32.mrb[0].mxu0
        %v1092 = vadd.f32 0.0, %v1091
        %v1093 = vpop.f32.mrb[0].mxu0
        %v1094 = vpop.f32.mrb[0].mxu0
        %v1095 = vpop.f32.mrb[0].mxu0
        %1096 = vdwg.mxu0
        %v1098 = vsel %vm1049, %v624, 0
        %v1101 = vsel %vm1053, %v1042, 0
        %1103 = vmatprep.subr.bf16.mxu0 0
        %1104 = vmatpush1.bf16.msra.mxu0 %v1101
        %1105 = vmatprep.subr.bf16.mxu0 0
        %1106 = vmatpush1.bf16.msra.mxu0 0
        %1107 = vmatprep.subr.bf16.mxu0 0
        %1108 = vmatpush1.bf16.msra.mxu0 0
        %1109 = vmatprep.subr.bf16.mxu0 0
        %1110 = vmatpush1.bf16.msra.mxu0 0
        %1111 = vmatprep.subr.bf16.mxu0 0
        %1112 = vmatpush1.bf16.msra.mxu0 0
        %1113 = vmatprep.subr.bf16.mxu0 0
        %1114 = vmatpush1.bf16.msra.mxu0 0
        %1115 = vmatprep.subr.bf16.mxu0 0
        %1116 = vmatpush1.bf16.msra.mxu0 0
        %1117 = vmatprep.subr.bf16.mxu0 0
        %1118 = vmatpush1.bf16.msra.mxu0 0
        %1119 = vmatprep.subr.bf16.mxu0 0
        %1120 = vmatpush1.bf16.msra.mxu0 0
        %1121 = vmatprep.subr.bf16.mxu0 0
        %1122 = vmatpush1.bf16.msra.mxu0 0
        %1123 = vmatprep.subr.bf16.mxu0 0
        %1124 = vmatpush1.bf16.msra.mxu0 0
        %1125 = vmatprep.subr.bf16.mxu0 0
        %1126 = vmatpush1.bf16.msra.mxu0 0
        %1127 = vmatprep.subr.bf16.mxu0 0
        %1128 = vmatpush1.bf16.msra.mxu0 0
        %1129 = vmatprep.subr.bf16.mxu0 0
        %1130 = vmatpush1.bf16.msra.mxu0 0
        %1131 = vmatprep.subr.bf16.mxu0 0
        %1132 = vmatpush1.bf16.msra.mxu0 0
        %1133 = vmatprep.subr.bf16.mxu0 0
        %1134 = vmatpush1.bf16.msra.mxu0 0
        %1135 = vmatprep.mubr.bf16.mxu0 0
        %1136 = vmatmul.mubr.bf16.gmra.mrb[0].mxu0 %v1098
        %v1137 = vpop.f32.mrb[0].mxu0
        %v1138 = vadd.f32 0.0, %v1137
        %v1139 = vpop.f32.mrb[0].mxu0
        %v1140 = vpop.f32.mrb[0].mxu0
        %v1141 = vpop.f32.mrb[0].mxu0
        %1142 = vdwg.mxu0
        %v1144 = vsel %vm1049, %v627, 0
        %v1147 = vsel %vm1053, %v1045, 0
        %1149 = vmatprep.subr.bf16.mxu0 0
        %1150 = vmatpush1.bf16.msra.mxu0 %v1147
        %1151 = vmatprep.subr.bf16.mxu0 0
        %1152 = vmatpush1.bf16.msra.mxu0 0
        %1153 = vmatprep.subr.bf16.mxu0 0
        %1154 = vmatpush1.bf16.msra.mxu0 0
        %1155 = vmatprep.subr.bf16.mxu0 0
        %1156 = vmatpush1.bf16.msra.mxu0 0
        %1157 = vmatprep.subr.bf16.mxu0 0
        %1158 = vmatpush1.bf16.msra.mxu0 0
        %1159 = vmatprep.subr.bf16.mxu0 0
        %1160 = vmatpush1.bf16.msra.mxu0 0
        %1161 = vmatprep.subr.bf16.mxu0 0
        %1162 = vmatpush1.bf16.msra.mxu0 0
        %1163 = vmatprep.subr.bf16.mxu0 0
        %1164 = vmatpush1.bf16.msra.mxu0 0
        %1165 = vmatprep.subr.bf16.mxu0 0
        %1166 = vmatpush1.bf16.msra.mxu0 0
        %1167 = vmatprep.subr.bf16.mxu0 0
        %1168 = vmatpush1.bf16.msra.mxu0 0
        %1169 = vmatprep.subr.bf16.mxu0 0
        %1170 = vmatpush1.bf16.msra.mxu0 0
        %1171 = vmatprep.subr.bf16.mxu0 0
        %1172 = vmatpush1.bf16.msra.mxu0 0
        %1173 = vmatprep.subr.bf16.mxu0 0
        %1174 = vmatpush1.bf16.msra.mxu0 0
        %1175 = vmatprep.subr.bf16.mxu0 0
        %1176 = vmatpush1.bf16.msra.mxu0 0
        %1177 = vmatprep.subr.bf16.mxu0 0
        %1178 = vmatpush1.bf16.msra.mxu0 0
        %1179 = vmatprep.subr.bf16.mxu0 0
        %1180 = vmatpush1.bf16.msra.mxu0 0
        %1181 = vmatprep.mubr.bf16.mxu0 0
        %1182 = vmatmul.mubr.bf16.gmra.mrb[0].mxu0 %v1144
        %v1183 = vpop.f32.mrb[0].mxu0
        %v1184 = vadd.f32 0.0, %v1183
        %v1185 = vpop.f32.mrb[0].mxu0
        %v1186 = vpop.f32.mrb[0].mxu0
        %v1187 = vpop.f32.mrb[0].mxu0
        %1188 = vdwg.mxu0
        %v1190 = vsel %vm1049, %v630, 0
        %v1193 = vsel %vm1053, %v1048, 0
        %1195 = vmatprep.subr.bf16.mxu0 0
        %1196 = vmatpush1.bf16.msra.mxu0 %v1193
        %1197 = vmatprep.subr.bf16.mxu0 0
        %1198 = vmatpush1.bf16.msra.mxu0 0
        %1199 = vmatprep.subr.bf16.mxu0 0
        %1200 = vmatpush1.bf16.msra.mxu0 0
        %1201 = vmatprep.subr.bf16.mxu0 0
        %1202 = vmatpush1.bf16.msra.mxu0 0
        %1203 = vmatprep.subr.bf16.mxu0 0
        %1204 = vmatpush1.bf16.msra.mxu0 0
        %1205 = vmatprep.subr.bf16.mxu0 0
        %1206 = vmatpush1.bf16.msra.mxu0 0
        %1207 = vmatprep.subr.bf16.mxu0 0
        %1208 = vmatpush1.bf16.msra.mxu0 0
        %1209 = vmatprep.subr.bf16.mxu0 0
        %1210 = vmatpush1.bf16.msra.mxu0 0
        %1211 = vmatprep.subr.bf16.mxu0 0
        %1212 = vmatpush1.bf16.msra.mxu0 0
        %1213 = vmatprep.subr.bf16.mxu0 0
        %1214 = vmatpush1.bf16.msra.mxu0 0
        %1215 = vmatprep.subr.bf16.mxu0 0
        %1216 = vmatpush1.bf16.msra.mxu0 0
        %1217 = vmatprep.subr.bf16.mxu0 0
        %1218 = vmatpush1.bf16.msra.mxu0 0
        %1219 = vmatprep.subr.bf16.mxu0 0
        %1220 = vmatpush1.bf16.msra.mxu0 0
        %1221 = vmatprep.subr.bf16.mxu0 0
        %1222 = vmatpush1.bf16.msra.mxu0 0
        %1223 = vmatprep.subr.bf16.mxu0 0
        %1224 = vmatpush1.bf16.msra.mxu0 0
        %1225 = vmatprep.subr.bf16.mxu0 0
        %1226 = vmatpush1.bf16.msra.mxu0 0
        %1227 = vmatprep.mubr.bf16.mxu0 0
        %1228 = vmatmul.mubr.bf16.gmra.mrb[0].mxu0 %v1190
        %v1229 = vpop.f32.mrb[0].mxu0
        %v1230 = vadd.f32 0.0, %v1229
        %v1231 = vpop.f32.mrb[0].mxu0
        %v1232 = vpop.f32.mrb[0].mxu0
        %v1233 = vpop.f32.mrb[0].mxu0
        %1234 = vdwg.mxu0
        %v1235 = vsel %vm1049, %v1092, -inf
        %1236 = vmax.xlane.f32.xlu0 %v1235
        %v1237 = vpop.xlane.xlu0 %1236
        %v1238 = vsel %vm1049, %v1138, -inf
        %1239 = vmax.xlane.f32.xlu0 %v1238
        %v1240 = vpop.xlane.xlu0 %1239
        %v1241 = vsel %vm1049, %v1184, -inf
        %1242 = vmax.xlane.f32.xlu0 %v1241
        %v1243 = vpop.xlane.xlu0 %1242
        %v1244 = vsel %vm1049, %v1230, -inf
        %1245 = vmax.xlane.f32.xlu0 %v1244
        %v1246 = vpop.xlane.xlu0 %1245
        %v1247 = vsub.f32 %v1092, %v1237
        %v1248 = vsub.f32 %v1138, %v1240
        %v1249 = vsub.f32 %v1184, %v1243
        %v1250 = vsub.f32 %v1230, %v1246
        %v1251 = vmul.f32 %v1247, 1.442695
        %v1252 = vpow.pop %v1251
        %v1253 = vmul.f32 %v1248, 1.442695
        %v1254 = vpow.pop %v1253
        %v1255 = vmul.f32 %v1249, 1.442695
        %v1256 = vpow.pop %v1255
        %v1257 = vmul.f32 %v1250, 1.442695
        %v1258 = vpow.pop %v1257
        %v1259 = vsel %vm1049, %v1252, 0.0
        %1260 = vadd.xlane.f32.xlu0 %v1259
        %v1261 = vpop.xlane.xlu0 %1260
        %v1262 = vsel %vm1049, %v1254, 0.0
        %1263 = vadd.xlane.f32.xlu0 %v1262
        %v1264 = vpop.xlane.xlu0 %1263
        %v1265 = vsel %vm1049, %v1256, 0.0
        %1266 = vadd.xlane.f32.xlu0 %v1265
        %v1267 = vpop.xlane.xlu0 %1266
        %v1268 = vsel %vm1049, %v1258, 0.0
        %1269 = vadd.xlane.f32.xlu0 %v1268
        %v1270 = vpop.xlane.xlu0 %1269
        %v1271 = vrcp.pop %v1261
        %v1272 = vrcp.pop %v1264
        %v1273 = vrcp.pop %v1267
        %v1274 = vrcp.pop %v1270
        %v1275 = vmul.f32 %v1252, %v1271
        %v1276 = vmul.f32 %v1254, %v1272
        %v1277 = vmul.f32 %v1256, %v1273
        %v1278 = vmul.f32 %v1258, %v1274
        %v1279 = vpack.c.bf16 %v1275, %v1275
        %v1280 = vpack.c.bf16 %v1276, %v1276
        %v1281 = vpack.c.bf16 %v1277, %v1277
        %v1282 = vpack.c.bf16 %v1278, %v1278
        %1283 = vxpose.xlu0.c.b16.start [1/8] %v561, 128
        %1284 = vxpose.xlu0.c.b16.cont [2/8] 0, 128
        %1285 = vxpose.xlu0.c.b16.cont [3/8] 0, 128
        %1286 = vxpose.xlu0.c.b16.cont [4/8] 0, 128
        %1287 = vxpose.xlu0.c.b16.cont [5/8] 0, 128
        %1288 = vxpose.xlu0.c.b16.cont [6/8] 0, 128
        %1289 = vxpose.xlu0.c.b16.cont [7/8] 0, 128
        %1290 = vxpose.xlu0.c.b16.end [8/8] 0, 128
        %v1291 = vpop.trf.xlu0
        %v1292 = vpop.trf.xlu0
        %v1293 = vpop.trf.xlu0
        %v1294 = vpop.trf.xlu0
        %v1295 = vpop.trf.xlu0
        %v1296 = vpop.trf.xlu0
        %v1297 = vpop.trf.xlu0
        %v1298 = vpop.trf.xlu0
        %1299 = vxpose.xlu0.c.b16.start [1/8] %v562, 128
        %1300 = vxpose.xlu0.c.b16.cont [2/8] 0, 128
        %1301 = vxpose.xlu0.c.b16.cont [3/8] 0, 128
        %1302 = vxpose.xlu0.c.b16.cont [4/8] 0, 128
        %1303 = vxpose.xlu0.c.b16.cont [5/8] 0, 128
        %1304 = vxpose.xlu0.c.b16.cont [6/8] 0, 128
        %1305 = vxpose.xlu0.c.b16.cont [7/8] 0, 128
        %1306 = vxpose.xlu0.c.b16.end [8/8] 0, 128
        %v1307 = vpop.trf.xlu0
        %v1308 = vpop.trf.xlu0
        %v1309 = vpop.trf.xlu0
        %v1310 = vpop.trf.xlu0
        %v1311 = vpop.trf.xlu0
        %v1312 = vpop.trf.xlu0
        %v1313 = vpop.trf.xlu0
        %v1314 = vpop.trf.xlu0
        %1315 = vxpose.xlu0.c.b16.start [1/8] %v563, 128
        %1316 = vxpose.xlu0.c.b16.cont [2/8] 0, 128
        %1317 = vxpose.xlu0.c.b16.cont [3/8] 0, 128
        %1318 = vxpose.xlu0.c.b16.cont [4/8] 0, 128
        %1319 = vxpose.xlu0.c.b16.cont [5/8] 0, 128
        %1320 = vxpose.xlu0.c.b16.cont [6/8] 0, 128
        %1321 = vxpose.xlu0.c.b16.cont [7/8] 0, 128
        %1322 = vxpose.xlu0.c.b16.end [8/8] 0, 128
        %v1323 = vpop.trf.xlu0
        %v1324 = vpop.trf.xlu0
        %v1325 = vpop.trf.xlu0
        %v1326 = vpop.trf.xlu0
        %v1327 = vpop.trf.xlu0
        %v1328 = vpop.trf.xlu0
        %v1329 = vpop.trf.xlu0
        %v1330 = vpop.trf.xlu0
        %1331 = vxpose.xlu0.c.b16.start [1/8] %v564, 128
        %1332 = vxpose.xlu0.c.b16.cont [2/8] 0, 128
        %1333 = vxpose.xlu0.c.b16.cont [3/8] 0, 128
        %1334 = vxpose.xlu0.c.b16.cont [4/8] 0, 128
        %1335 = vxpose.xlu0.c.b16.cont [5/8] 0, 128
        %1336 = vxpose.xlu0.c.b16.cont [6/8] 0, 128
        %1337 = vxpose.xlu0.c.b16.cont [7/8] 0, 128
        %1338 = vxpose.xlu0.c.b16.end [8/8] 0, 128
        %v1339 = vpop.trf.xlu0
        %v1340 = vpop.trf.xlu0
        %v1341 = vpop.trf.xlu0
        %v1342 = vpop.trf.xlu0
        %v1343 = vpop.trf.xlu0
        %v1344 = vpop.trf.xlu0
        %v1345 = vpop.trf.xlu0
        %v1346 = vpop.trf.xlu0
        %1347 = vxpose.xlu0.c.b16.start [1/8] %v565, 128
        %1348 = vxpose.xlu0.c.b16.cont [2/8] 0, 128
        %1349 = vxpose.xlu0.c.b16.cont [3/8] 0, 128
        %1350 = vxpose.xlu0.c.b16.cont [4/8] 0, 128
        %1351 = vxpose.xlu0.c.b16.cont [5/8] 0, 128
        %1352 = vxpose.xlu0.c.b16.cont [6/8] 0, 128
        %1353 = vxpose.xlu0.c.b16.cont [7/8] 0, 128
        %1354 = vxpose.xlu0.c.b16.end [8/8] 0, 128
        %v1355 = vpop.trf.xlu0
        %v1356 = vpop.trf.xlu0
        %v1357 = vpop.trf.xlu0
        %v1358 = vpop.trf.xlu0
        %v1359 = vpop.trf.xlu0
        %v1360 = vpop.trf.xlu0
        %v1361 = vpop.trf.xlu0
        %v1362 = vpop.trf.xlu0
        %1363 = vxpose.xlu0.c.b16.start [1/8] %v566, 128
        %1364 = vxpose.xlu0.c.b16.cont [2/8] 0, 128
        %1365 = vxpose.xlu0.c.b16.cont [3/8] 0, 128
        %1366 = vxpose.xlu0.c.b16.cont [4/8] 0, 128
        %1367 = vxpose.xlu0.c.b16.cont [5/8] 0, 128
        %1368 = vxpose.xlu0.c.b16.cont [6/8] 0, 128
        %1369 = vxpose.xlu0.c.b16.cont [7/8] 0, 128
        %1370 = vxpose.xlu0.c.b16.end [8/8] 0, 128
        %v1371 = vpop.trf.xlu0
        %v1372 = vpop.trf.xlu0
        %v1373 = vpop.trf.xlu0
        %v1374 = vpop.trf.xlu0
        %v1375 = vpop.trf.xlu0
        %v1376 = vpop.trf.xlu0
        %v1377 = vpop.trf.xlu0
        %v1378 = vpop.trf.xlu0
        %1379 = vxpose.xlu0.c.b16.start [1/8] %v567, 128
        %1380 = vxpose.xlu0.c.b16.cont [2/8] 0, 128
        %1381 = vxpose.xlu0.c.b16.cont [3/8] 0, 128
        %1382 = vxpose.xlu0.c.b16.cont [4/8] 0, 128
        %1383 = vxpose.xlu0.c.b16.cont [5/8] 0, 128
        %1384 = vxpose.xlu0.c.b16.cont [6/8] 0, 128
        %1385 = vxpose.xlu0.c.b16.cont [7/8] 0, 128
        %1386 = vxpose.xlu0.c.b16.end [8/8] 0, 128
        %v1387 = vpop.trf.xlu0
        %v1388 = vpop.trf.xlu0
        %v1389 = vpop.trf.xlu0
        %v1390 = vpop.trf.xlu0
        %v1391 = vpop.trf.xlu0
        %v1392 = vpop.trf.xlu0
        %v1393 = vpop.trf.xlu0
        %v1394 = vpop.trf.xlu0
        %1395 = vxpose.xlu0.c.b16.start [1/8] %v568, 128
        %1396 = vxpose.xlu0.c.b16.cont [2/8] 0, 128
        %1397 = vxpose.xlu0.c.b16.cont [3/8] 0, 128
        %1398 = vxpose.xlu0.c.b16.cont [4/8] 0, 128
        %1399 = vxpose.xlu0.c.b16.cont [5/8] 0, 128
        %1400 = vxpose.xlu0.c.b16.cont [6/8] 0, 128
        %1401 = vxpose.xlu0.c.b16.cont [7/8] 0, 128
        %1402 = vxpose.xlu0.c.b16.end [8/8] 0, 128
        %v1403 = vpop.trf.xlu0
        %v1404 = vpop.trf.xlu0
        %v1405 = vpop.trf.xlu0
        %v1406 = vpop.trf.xlu0
        %v1407 = vpop.trf.xlu0
        %v1408 = vpop.trf.xlu0
        %v1409 = vpop.trf.xlu0
        %v1410 = vpop.trf.xlu0
        %v1411 = vcombine.low %v1291, %v1355
        %v1413 = vunpack.c.l.s4 1983009808
        %v1414 = vunpack.c.0.s8 %v1413
        %v1415 = vlaneseq
        %v1416 = vshrl.u32 %v1415, 7
        %v1417 = vsub.s32 %v1414, %v1416
        %v1418 = vrot.slane %v1411, %v1417
        %v1419 = vcombine.low %v1323, %v1387
        %v1421 = vunpack.c.l.s4 1983009808
        %v1422 = vunpack.c.0.s8 %v1421
        %v1423 = vlaneseq
        %v1424 = vshrl.u32 %v1423, 7
        %v1425 = vsub.s32 %v1422, %v1424
        %v1426 = vrot.slane %v1419, %v1425
        %v1427 = vcombine.low %v1418, %v1426
        %v1428 = vcombine.high %v1418, %v1426
        %v1430 = vunpack.c.l.s4 1934713408
        %v1431 = vunpack.c.0.s8 %v1430
        %v1432 = vlaneseq
        %v1433 = vshrl.u32 %v1432, 7
        %v1434 = vsub.s32 %v1431, %v1433
        %v1435 = vrot.slane %v1427, %v1434
        %v1437 = vunpack.c.l.s4 1934713408
        %v1438 = vunpack.c.0.s8 %v1437
        %v1439 = vlaneseq
        %v1440 = vshrl.u32 %v1439, 7
        %v1441 = vsub.s32 %v1438, %v1440
        %v1442 = vrot.slane %v1428, %v1441
        %v1443 = vcombine.high %v1435, 0
        %v1444 = vcombine.high %v1442, 0
        %v1445 = vcombine.low %v1307, %v1371
        %v1447 = vunpack.c.l.s4 1983009808
        %v1448 = vunpack.c.0.s8 %v1447
        %v1449 = vlaneseq
        %v1450 = vshrl.u32 %v1449, 7
        %v1451 = vsub.s32 %v1448, %v1450
        %v1452 = vrot.slane %v1445, %v1451
        %v1453 = vcombine.low %v1339, %v1403
        %v1455 = vunpack.c.l.s4 1983009808
        %v1456 = vunpack.c.0.s8 %v1455
        %v1457 = vlaneseq
        %v1458 = vshrl.u32 %v1457, 7
        %v1459 = vsub.s32 %v1456, %v1458
        %v1460 = vrot.slane %v1453, %v1459
        %v1461 = vcombine.low %v1452, %v1460
        %v1462 = vcombine.high %v1452, %v1460
        %v1464 = vunpack.c.l.s4 1934713408
        %v1465 = vunpack.c.0.s8 %v1464
        %v1466 = vlaneseq
        %v1467 = vshrl.u32 %v1466, 7
        %v1468 = vsub.s32 %v1465, %v1467
        %v1469 = vrot.slane %v1461, %v1468
        %v1471 = vunpack.c.l.s4 1934713408
        %v1472 = vunpack.c.0.s8 %v1471
        %v1473 = vlaneseq
        %v1474 = vshrl.u32 %v1473, 7
        %v1475 = vsub.s32 %v1472, %v1474
        %v1476 = vrot.slane %v1462, %v1475
        %v1477 = vcombine.high %v1469, 0
        %v1478 = vcombine.high %v1476, 0
        %v1481 = vpack.i.b16 %v1469, %v1435
        %v1483 = vshrl.u32 %v1435, 16
        %v1484 = vshrl.u32 %v1469, 16
        %v1485 = vpack.i.b16 %v1484, %v1483
        %v1489 = vpack.i.b16 %v1477, %v1443
        %v1491 = vshrl.u32 %v1443, 16
        %v1492 = vshrl.u32 %v1477, 16
        %v1493 = vpack.i.b16 %v1492, %v1491
        %v1497 = vpack.i.b16 %v1476, %v1442
        %v1499 = vshrl.u32 %v1442, 16
        %v1500 = vshrl.u32 %v1476, 16
        %v1501 = vpack.i.b16 %v1500, %v1499
        %v1505 = vpack.i.b16 %v1478, %v1444
        %v1507 = vshrl.u32 %v1444, 16
        %v1508 = vshrl.u32 %v1478, 16
        %v1509 = vpack.i.b16 %v1508, %v1507
        %1511 = vxpose.xlu0.c.b16.start [1/8] %v1481, 128
        %1512 = vxpose.xlu0.c.b16.cont [2/8] 0, 128
        %1513 = vxpose.xlu0.c.b16.cont [3/8] 0, 128
        %1514 = vxpose.xlu0.c.b16.cont [4/8] 0, 128
        %1515 = vxpose.xlu0.c.b16.cont [5/8] 0, 128
        %1516 = vxpose.xlu0.c.b16.cont [6/8] 0, 128
        %1517 = vxpose.xlu0.c.b16.cont [7/8] 0, 128
        %1518 = vxpose.xlu0.c.b16.end [8/8] 0, 128
        %v1519 = vpop.trf.xlu0
        %v1520 = vpop.trf.xlu0
        %v1521 = vpop.trf.xlu0
        %v1522 = vpop.trf.xlu0
        %v1523 = vpop.trf.xlu0
        %v1524 = vpop.trf.xlu0
        %v1525 = vpop.trf.xlu0
        %v1526 = vpop.trf.xlu0
        %1527 = vxpose.xlu0.c.b16.start [1/8] %v1485, 128
        %1528 = vxpose.xlu0.c.b16.cont [2/8] 0, 128
        %1529 = vxpose.xlu0.c.b16.cont [3/8] 0, 128
        %1530 = vxpose.xlu0.c.b16.cont [4/8] 0, 128
        %1531 = vxpose.xlu0.c.b16.cont [5/8] 0, 128
        %1532 = vxpose.xlu0.c.b16.cont [6/8] 0, 128
        %1533 = vxpose.xlu0.c.b16.cont [7/8] 0, 128
        %1534 = vxpose.xlu0.c.b16.end [8/8] 0, 128
        %v1535 = vpop.trf.xlu0
        %v1536 = vpop.trf.xlu0
        %v1537 = vpop.trf.xlu0
        %v1538 = vpop.trf.xlu0
        %v1539 = vpop.trf.xlu0
        %v1540 = vpop.trf.xlu0
        %v1541 = vpop.trf.xlu0
        %v1542 = vpop.trf.xlu0
        %1543 = vxpose.xlu0.c.b16.start [1/8] %v1489, 128
        %1544 = vxpose.xlu0.c.b16.cont [2/8] 0, 128
        %1545 = vxpose.xlu0.c.b16.cont [3/8] 0, 128
        %1546 = vxpose.xlu0.c.b16.cont [4/8] 0, 128
        %1547 = vxpose.xlu0.c.b16.cont [5/8] 0, 128
        %1548 = vxpose.xlu0.c.b16.cont [6/8] 0, 128
        %1549 = vxpose.xlu0.c.b16.cont [7/8] 0, 128
        %1550 = vxpose.xlu0.c.b16.end [8/8] 0, 128
        %v1551 = vpop.trf.xlu0
        %v1552 = vpop.trf.xlu0
        %v1553 = vpop.trf.xlu0
        %v1554 = vpop.trf.xlu0
        %v1555 = vpop.trf.xlu0
        %v1556 = vpop.trf.xlu0
        %v1557 = vpop.trf.xlu0
        %v1558 = vpop.trf.xlu0
        %1559 = vxpose.xlu0.c.b16.start [1/8] %v1493, 128
        %1560 = vxpose.xlu0.c.b16.cont [2/8] 0, 128
        %1561 = vxpose.xlu0.c.b16.cont [3/8] 0, 128
        %1562 = vxpose.xlu0.c.b16.cont [4/8] 0, 128
        %1563 = vxpose.xlu0.c.b16.cont [5/8] 0, 128
        %1564 = vxpose.xlu0.c.b16.cont [6/8] 0, 128
        %1565 = vxpose.xlu0.c.b16.cont [7/8] 0, 128
        %1566 = vxpose.xlu0.c.b16.end [8/8] 0, 128
        %v1567 = vpop.trf.xlu0
        %v1568 = vpop.trf.xlu0
        %v1569 = vpop.trf.xlu0
        %v1570 = vpop.trf.xlu0
        %v1571 = vpop.trf.xlu0
        %v1572 = vpop.trf.xlu0
        %v1573 = vpop.trf.xlu0
        %v1574 = vpop.trf.xlu0
        %1575 = vxpose.xlu0.c.b16.start [1/8] %v1497, 128
        %1576 = vxpose.xlu0.c.b16.cont [2/8] 0, 128
        %1577 = vxpose.xlu0.c.b16.cont [3/8] 0, 128
        %1578 = vxpose.xlu0.c.b16.cont [4/8] 0, 128
        %1579 = vxpose.xlu0.c.b16.cont [5/8] 0, 128
        %1580 = vxpose.xlu0.c.b16.cont [6/8] 0, 128
        %1581 = vxpose.xlu0.c.b16.cont [7/8] 0, 128
        %1582 = vxpose.xlu0.c.b16.end [8/8] 0, 128
        %v1583 = vpop.trf.xlu0
        %v1584 = vpop.trf.xlu0
        %v1585 = vpop.trf.xlu0
        %v1586 = vpop.trf.xlu0
        %v1587 = vpop.trf.xlu0
        %v1588 = vpop.trf.xlu0
        %v1589 = vpop.trf.xlu0
        %v1590 = vpop.trf.xlu0
        %1591 = vxpose.xlu0.c.b16.start [1/8] %v1501, 128
        %1592 = vxpose.xlu0.c.b16.cont [2/8] 0, 128
        %1593 = vxpose.xlu0.c.b16.cont [3/8] 0, 128
        %1594 = vxpose.xlu0.c.b16.cont [4/8] 0, 128
        %1595 = vxpose.xlu0.c.b16.cont [5/8] 0, 128
        %1596 = vxpose.xlu0.c.b16.cont [6/8] 0, 128
        %1597 = vxpose.xlu0.c.b16.cont [7/8] 0, 128
        %1598 = vxpose.xlu0.c.b16.end [8/8] 0, 128
        %v1599 = vpop.trf.xlu0
        %v1600 = vpop.trf.xlu0
        %v1601 = vpop.trf.xlu0
        %v1602 = vpop.trf.xlu0
        %v1603 = vpop.trf.xlu0
        %v1604 = vpop.trf.xlu0
        %v1605 = vpop.trf.xlu0
        %v1606 = vpop.trf.xlu0
        %1607 = vxpose.xlu0.c.b16.start [1/8] %v1505, 128
        %1608 = vxpose.xlu0.c.b16.cont [2/8] 0, 128
        %1609 = vxpose.xlu0.c.b16.cont [3/8] 0, 128
        %1610 = vxpose.xlu0.c.b16.cont [4/8] 0, 128
        %1611 = vxpose.xlu0.c.b16.cont [5/8] 0, 128
        %1612 = vxpose.xlu0.c.b16.cont [6/8] 0, 128
        %1613 = vxpose.xlu0.c.b16.cont [7/8] 0, 128
        %1614 = vxpose.xlu0.c.b16.end [8/8] 0, 128
        %v1615 = vpop.trf.xlu0
        %v1616 = vpop.trf.xlu0
        %v1617 = vpop.trf.xlu0
        %v1618 = vpop.trf.xlu0
        %v1619 = vpop.trf.xlu0
        %v1620 = vpop.trf.xlu0
        %v1621 = vpop.trf.xlu0
        %v1622 = vpop.trf.xlu0
        %1623 = vxpose.xlu0.c.b16.start [1/8] %v1509, 128
        %1624 = vxpose.xlu0.c.b16.cont [2/8] 0, 128
        %1625 = vxpose.xlu0.c.b16.cont [3/8] 0, 128
        %1626 = vxpose.xlu0.c.b16.cont [4/8] 0, 128
        %1627 = vxpose.xlu0.c.b16.cont [5/8] 0, 128
        %1628 = vxpose.xlu0.c.b16.cont [6/8] 0, 128
        %1629 = vxpose.xlu0.c.b16.cont [7/8] 0, 128
        %1630 = vxpose.xlu0.c.b16.end [8/8] 0, 128
        %v1631 = vpop.trf.xlu0
        %v1632 = vpop.trf.xlu0
        %v1633 = vpop.trf.xlu0
        %v1634 = vpop.trf.xlu0
        %v1635 = vpop.trf.xlu0
        %v1636 = vpop.trf.xlu0
        %v1637 = vpop.trf.xlu0
        %v1638 = vpop.trf.xlu0
        %v1639 = vcombine.low %v1519, %v1583
        %v1641 = vunpack.c.l.s4 1983009808
        %v1642 = vunpack.c.0.s8 %v1641
        %v1643 = vlaneseq
        %v1644 = vshrl.u32 %v1643, 7
        %v1645 = vsub.s32 %v1642, %v1644
        %v1646 = vrot.slane %v1639, %v1645
        %v1647 = vcombine.low %v1551, %v1615
        %v1649 = vunpack.c.l.s4 1983009808
        %v1650 = vunpack.c.0.s8 %v1649
        %v1651 = vlaneseq
        %v1652 = vshrl.u32 %v1651, 7
        %v1653 = vsub.s32 %v1650, %v1652
        %v1654 = vrot.slane %v1647, %v1653
        %v1655 = vcombine.low %v1646, %v1654
        %v1657 = vunpack.c.l.s4 1934713408
        %v1658 = vunpack.c.0.s8 %v1657
        %v1659 = vlaneseq
        %v1660 = vshrl.u32 %v1659, 7
        %v1661 = vsub.s32 %v1658, %v1660
        %v1662 = vrot.slane %v1655, %v1661
        %v1663 = vcombine.high %v1662, 0
        %v1664 = vcombine.low %v1535, %v1599
        %v1666 = vunpack.c.l.s4 1983009808
        %v1667 = vunpack.c.0.s8 %v1666
        %v1668 = vlaneseq
        %v1669 = vshrl.u32 %v1668, 7
        %v1670 = vsub.s32 %v1667, %v1669
        %v1671 = vrot.slane %v1664, %v1670
        %v1672 = vcombine.low %v1567, %v1631
        %v1674 = vunpack.c.l.s4 1983009808
        %v1675 = vunpack.c.0.s8 %v1674
        %v1676 = vlaneseq
        %v1677 = vshrl.u32 %v1676, 7
        %v1678 = vsub.s32 %v1675, %v1677
        %v1679 = vrot.slane %v1672, %v1678
        %v1680 = vcombine.low %v1671, %v1679
        %v1682 = vunpack.c.l.s4 1934713408
        %v1683 = vunpack.c.0.s8 %v1682
        %v1684 = vlaneseq
        %v1685 = vshrl.u32 %v1684, 7
        %v1686 = vsub.s32 %v1683, %v1685
        %v1687 = vrot.slane %v1680, %v1686
        %v1688 = vcombine.high %v1687, 0
        %v1691 = vpack.i.b16 %v1687, %v1662
        %v1692 = vshrl.u32 %v1662, 16
        %v1693 = vshrl.u32 %v1687, 16
        %v1694 = vpack.i.b16 %v1693, %v1692
        %v1697 = vpack.i.b16 %v1688, %v1663
        %v1698 = vshrl.u32 %v1663, 16
        %v1699 = vshrl.u32 %v1688, 16
        %v1700 = vpack.i.b16 %v1699, %v1698
        %v1702 = vsel %vm1049, %v1691, 0
        %v1705 = vsel %vm1049, %v1279, 0
        %1707 = vmatprep.subr.bf16.mxu0 0
        %1708 = vmatpush1.bf16.xpose.msra.mxu0 %v1705
        %1709 = vmatprep.subr.bf16.mxu0 0
        %1710 = vmatpush1.bf16.xpose.msra.mxu0 0
        %1711 = vmatprep.subr.bf16.mxu0 0
        %1712 = vmatpush1.bf16.xpose.msra.mxu0 0
        %1713 = vmatprep.subr.bf16.mxu0 0
        %1714 = vmatpush1.bf16.xpose.msra.mxu0 0
        %1715 = vmatprep.subr.bf16.mxu0 0
        %1716 = vmatpush1.bf16.xpose.msra.mxu0 0
        %1717 = vmatprep.subr.bf16.mxu0 0
        %1718 = vmatpush1.bf16.xpose.msra.mxu0 0
        %1719 = vmatprep.subr.bf16.mxu0 0
        %1720 = vmatpush1.bf16.xpose.msra.mxu0 0
        %1721 = vmatprep.subr.bf16.mxu0 0
        %1722 = vmatpush1.bf16.xpose.msra.mxu0 0
        %1723 = vmatprep.subr.bf16.mxu0 0
        %1724 = vmatpush1.bf16.xpose.msra.mxu0 0
        %1725 = vmatprep.subr.bf16.mxu0 0
        %1726 = vmatpush1.bf16.xpose.msra.mxu0 0
        %1727 = vmatprep.subr.bf16.mxu0 0
        %1728 = vmatpush1.bf16.xpose.msra.mxu0 0
        %1729 = vmatprep.subr.bf16.mxu0 0
        %1730 = vmatpush1.bf16.xpose.msra.mxu0 0
        %1731 = vmatprep.subr.bf16.mxu0 0
        %1732 = vmatpush1.bf16.xpose.msra.mxu0 0
        %1733 = vmatprep.subr.bf16.mxu0 0
        %1734 = vmatpush1.bf16.xpose.msra.mxu0 0
        %1735 = vmatprep.subr.bf16.mxu0 0
        %1736 = vmatpush1.bf16.xpose.msra.mxu0 0
        %1737 = vmatprep.subr.bf16.mxu0 0
        %1738 = vmatpush1.bf16.xpose.msra.mxu0 0
        %1739 = vmatprep.mubr.bf16.mxu0 0
        %1740 = vmatmul.mubr.bf16.gmra.mrb[0].mxu0 %v1702
        %v1741 = vpop.f32.mrb[0].mxu0
        %v1742 = vadd.f32 0.0, %v1741
        %v1743 = vpop.f32.mrb[0].mxu0
        %v1744 = vpop.f32.mrb[0].mxu0
        %v1745 = vpop.f32.mrb[0].mxu0
        %1746 = vdwg.mxu0
        %v1748 = vsel %vm1049, %v1694, 0
        %v1751 = vsel %vm1049, %v1280, 0
        %1753 = vmatprep.subr.bf16.mxu0 0
        %1754 = vmatpush1.bf16.xpose.msra.mxu0 %v1751
        %1755 = vmatprep.subr.bf16.mxu0 0
        %1756 = vmatpush1.bf16.xpose.msra.mxu0 0
        %1757 = vmatprep.subr.bf16.mxu0 0
        %1758 = vmatpush1.bf16.xpose.msra.mxu0 0
        %1759 = vmatprep.subr.bf16.mxu0 0
        %1760 = vmatpush1.bf16.xpose.msra.mxu0 0
        %1761 = vmatprep.subr.bf16.mxu0 0
        %1762 = vmatpush1.bf16.xpose.msra.mxu0 0
        %1763 = vmatprep.subr.bf16.mxu0 0
        %1764 = vmatpush1.bf16.xpose.msra.mxu0 0
        %1765 = vmatprep.subr.bf16.mxu0 0
        %1766 = vmatpush1.bf16.xpose.msra.mxu0 0
        %1767 = vmatprep.subr.bf16.mxu0 0
        %1768 = vmatpush1.bf16.xpose.msra.mxu0 0
        %1769 = vmatprep.subr.bf16.mxu0 0
        %1770 = vmatpush1.bf16.xpose.msra.mxu0 0
        %1771 = vmatprep.subr.bf16.mxu0 0
        %1772 = vmatpush1.bf16.xpose.msra.mxu0 0
        %1773 = vmatprep.subr.bf16.mxu0 0
        %1774 = vmatpush1.bf16.xpose.msra.mxu0 0
        %1775 = vmatprep.subr.bf16.mxu0 0
        %1776 = vmatpush1.bf16.xpose.msra.mxu0 0
        %1777 = vmatprep.subr.bf16.mxu0 0
        %1778 = vmatpush1.bf16.xpose.msra.mxu0 0
        %1779 = vmatprep.subr.bf16.mxu0 0
        %1780 = vmatpush1.bf16.xpose.msra.mxu0 0
        %1781 = vmatprep.subr.bf16.mxu0 0
        %1782 = vmatpush1.bf16.xpose.msra.mxu0 0
        %1783 = vmatprep.subr.bf16.mxu0 0
        %1784 = vmatpush1.bf16.xpose.msra.mxu0 0
        %1785 = vmatprep.mubr.bf16.mxu0 0
        %1786 = vmatmul.mubr.bf16.gmra.mrb[0].mxu0 %v1748
        %v1787 = vpop.f32.mrb[0].mxu0
        %v1788 = vadd.f32 0.0, %v1787
        %v1789 = vpop.f32.mrb[0].mxu0
        %v1790 = vpop.f32.mrb[0].mxu0
        %v1791 = vpop.f32.mrb[0].mxu0
        %1792 = vdwg.mxu0
        %v1794 = vsel %vm1049, %v1697, 0
        %v1797 = vsel %vm1049, %v1281, 0
        %1799 = vmatprep.subr.bf16.mxu0 0
        %1800 = vmatpush1.bf16.xpose.msra.mxu0 %v1797
        %1801 = vmatprep.subr.bf16.mxu0 0
        %1802 = vmatpush1.bf16.xpose.msra.mxu0 0
        %1803 = vmatprep.subr.bf16.mxu0 0
        %1804 = vmatpush1.bf16.xpose.msra.mxu0 0
        %1805 = vmatprep.subr.bf16.mxu0 0
        %1806 = vmatpush1.bf16.xpose.msra.mxu0 0
        %1807 = vmatprep.subr.bf16.mxu0 0
        %1808 = vmatpush1.bf16.xpose.msra.mxu0 0
        %1809 = vmatprep.subr.bf16.mxu0 0
        %1810 = vmatpush1.bf16.xpose.msra.mxu0 0
        %1811 = vmatprep.subr.bf16.mxu0 0
        %1812 = vmatpush1.bf16.xpose.msra.mxu0 0
        %1813 = vmatprep.subr.bf16.mxu0 0
        %1814 = vmatpush1.bf16.xpose.msra.mxu0 0
        %1815 = vmatprep.subr.bf16.mxu0 0
        %1816 = vmatpush1.bf16.xpose.msra.mxu0 0
        %1817 = vmatprep.subr.bf16.mxu0 0
        %1818 = vmatpush1.bf16.xpose.msra.mxu0 0
        %1819 = vmatprep.subr.bf16.mxu0 0
        %1820 = vmatpush1.bf16.xpose.msra.mxu0 0
        %1821 = vmatprep.subr.bf16.mxu0 0
        %1822 = vmatpush1.bf16.xpose.msra.mxu0 0
        %1823 = vmatprep.subr.bf16.mxu0 0
        %1824 = vmatpush1.bf16.xpose.msra.mxu0 0
        %1825 = vmatprep.subr.bf16.mxu0 0
        %1826 = vmatpush1.bf16.xpose.msra.mxu0 0
        %1827 = vmatprep.subr.bf16.mxu0 0
        %1828 = vmatpush1.bf16.xpose.msra.mxu0 0
        %1829 = vmatprep.subr.bf16.mxu0 0
        %1830 = vmatpush1.bf16.xpose.msra.mxu0 0
        %1831 = vmatprep.mubr.bf16.mxu0 0
        %1832 = vmatmul.mubr.bf16.gmra.mrb[0].mxu0 %v1794
        %v1833 = vpop.f32.mrb[0].mxu0
        %v1834 = vadd.f32 0.0, %v1833
        %v1835 = vpop.f32.mrb[0].mxu0
        %v1836 = vpop.f32.mrb[0].mxu0
        %v1837 = vpop.f32.mrb[0].mxu0
        %1838 = vdwg.mxu0
        %v1840 = vsel %vm1049, %v1700, 0
        %v1843 = vsel %vm1049, %v1282, 0
        %1845 = vmatprep.subr.bf16.mxu0 0
        %1846 = vmatpush1.bf16.xpose.msra.mxu0 %v1843
        %1847 = vmatprep.subr.bf16.mxu0 0
        %1848 = vmatpush1.bf16.xpose.msra.mxu0 0
        %1849 = vmatprep.subr.bf16.mxu0 0
        %1850 = vmatpush1.bf16.xpose.msra.mxu0 0
        %1851 = vmatprep.subr.bf16.mxu0 0
        %1852 = vmatpush1.bf16.xpose.msra.mxu0 0
        %1853 = vmatprep.subr.bf16.mxu0 0
        %1854 = vmatpush1.bf16.xpose.msra.mxu0 0
        %1855 = vmatprep.subr.bf16.mxu0 0
        %1856 = vmatpush1.bf16.xpose.msra.mxu0 0
        %1857 = vmatprep.subr.bf16.mxu0 0
        %1858 = vmatpush1.bf16.xpose.msra.mxu0 0
        %1859 = vmatprep.subr.bf16.mxu0 0
        %1860 = vmatpush1.bf16.xpose.msra.mxu0 0
        %1861 = vmatprep.subr.bf16.mxu0 0
        %1862 = vmatpush1.bf16.xpose.msra.mxu0 0
        %1863 = vmatprep.subr.bf16.mxu0 0
        %1864 = vmatpush1.bf16.xpose.msra.mxu0 0
        %1865 = vmatprep.subr.bf16.mxu0 0
        %1866 = vmatpush1.bf16.xpose.msra.mxu0 0
        %1867 = vmatprep.subr.bf16.mxu0 0
        %1868 = vmatpush1.bf16.xpose.msra.mxu0 0
        %1869 = vmatprep.subr.bf16.mxu0 0
        %1870 = vmatpush1.bf16.xpose.msra.mxu0 0
        %1871 = vmatprep.subr.bf16.mxu0 0
        %1872 = vmatpush1.bf16.xpose.msra.mxu0 0
        %1873 = vmatprep.subr.bf16.mxu0 0
        %1874 = vmatpush1.bf16.xpose.msra.mxu0 0
        %1875 = vmatprep.subr.bf16.mxu0 0
        %1876 = vmatpush1.bf16.xpose.msra.mxu0 0
        %1877 = vmatprep.mubr.bf16.mxu0 0
        %1878 = vmatmul.mubr.bf16.gmra.mrb[0].mxu0 %v1840
        %v1879 = vpop.f32.mrb[0].mxu0
        %v1880 = vadd.f32 0.0, %v1879
        %v1881 = vpop.f32.mrb[0].mxu0
        %v1882 = vpop.f32.mrb[0].mxu0
        %v1883 = vpop.f32.mrb[0].mxu0
        %1884 = vdwg.mxu0
        %1885 = vxpose.xlu0.b32.start [1/16] %v1742, 128
        %1886 = vxpose.xlu0.b32.cont [2/16] 0.0, 128
        %1887 = vxpose.xlu0.b32.cont [3/16] 0.0, 128
        %1888 = vxpose.xlu0.b32.cont [4/16] 0.0, 128
        %1889 = vxpose.xlu0.b32.cont [5/16] 0.0, 128
        %1890 = vxpose.xlu0.b32.cont [6/16] 0.0, 128
        %1891 = vxpose.xlu0.b32.cont [7/16] 0.0, 128
        %1892 = vxpose.xlu0.b32.cont [8/16] 0.0, 128
        %1893 = vxpose.xlu0.b32.cont [9/16] 0.0, 128
        %1894 = vxpose.xlu0.b32.cont [10/16] 0.0, 128
        %1895 = vxpose.xlu0.b32.cont [11/16] 0.0, 128
        %1896 = vxpose.xlu0.b32.cont [12/16] 0.0, 128
        %1897 = vxpose.xlu0.b32.cont [13/16] 0.0, 128
        %1898 = vxpose.xlu0.b32.cont [14/16] 0.0, 128
        %1899 = vxpose.xlu0.b32.cont [15/16] 0.0, 128
        %1900 = vxpose.xlu0.b32.end [16/16] 0.0, 128
        %v1901 = vpop.trf.xlu0
        %v1902 = vpop.trf.xlu0
        %v1903 = vpop.trf.xlu0
        %v1904 = vpop.trf.xlu0
        %v1905 = vpop.trf.xlu0
        %v1906 = vpop.trf.xlu0
        %v1907 = vpop.trf.xlu0
        %v1908 = vpop.trf.xlu0
        %v1909 = vpop.trf.xlu0
        %v1910 = vpop.trf.xlu0
        %v1911 = vpop.trf.xlu0
        %v1912 = vpop.trf.xlu0
        %v1913 = vpop.trf.xlu0
        %v1914 = vpop.trf.xlu0
        %v1915 = vpop.trf.xlu0
        %v1916 = vpop.trf.xlu0
        %1917 = vxpose.xlu0.b32.start [1/16] %v1788, 128
        %1918 = vxpose.xlu0.b32.cont [2/16] 0.0, 128
        %1919 = vxpose.xlu0.b32.cont [3/16] 0.0, 128
        %1920 = vxpose.xlu0.b32.cont [4/16] 0.0, 128
        %1921 = vxpose.xlu0.b32.cont [5/16] 0.0, 128
        %1922 = vxpose.xlu0.b32.cont [6/16] 0.0, 128
        %1923 = vxpose.xlu0.b32.cont [7/16] 0.0, 128
        %1924 = vxpose.xlu0.b32.cont [8/16] 0.0, 128
        %1925 = vxpose.xlu0.b32.cont [9/16] 0.0, 128
        %1926 = vxpose.xlu0.b32.cont [10/16] 0.0, 128
        %1927 = vxpose.xlu0.b32.cont [11/16] 0.0, 128
        %1928 = vxpose.xlu0.b32.cont [12/16] 0.0, 128
        %1929 = vxpose.xlu0.b32.cont [13/16] 0.0, 128
        %1930 = vxpose.xlu0.b32.cont [14/16] 0.0, 128
        %1931 = vxpose.xlu0.b32.cont [15/16] 0.0, 128
        %1932 = vxpose.xlu0.b32.end [16/16] 0.0, 128
        %v1933 = vpop.trf.xlu0
        %v1934 = vpop.trf.xlu0
        %v1935 = vpop.trf.xlu0
        %v1936 = vpop.trf.xlu0
        %v1937 = vpop.trf.xlu0
        %v1938 = vpop.trf.xlu0
        %v1939 = vpop.trf.xlu0
        %v1940 = vpop.trf.xlu0
        %v1941 = vpop.trf.xlu0
        %v1942 = vpop.trf.xlu0
        %v1943 = vpop.trf.xlu0
        %v1944 = vpop.trf.xlu0
        %v1945 = vpop.trf.xlu0
        %v1946 = vpop.trf.xlu0
        %v1947 = vpop.trf.xlu0
        %v1948 = vpop.trf.xlu0
        %1949 = vxpose.xlu0.b32.start [1/16] %v1834, 128
        %1950 = vxpose.xlu0.b32.cont [2/16] 0.0, 128
        %1951 = vxpose.xlu0.b32.cont [3/16] 0.0, 128
        %1952 = vxpose.xlu0.b32.cont [4/16] 0.0, 128
        %1953 = vxpose.xlu0.b32.cont [5/16] 0.0, 128
        %1954 = vxpose.xlu0.b32.cont [6/16] 0.0, 128
        %1955 = vxpose.xlu0.b32.cont [7/16] 0.0, 128
        %1956 = vxpose.xlu0.b32.cont [8/16] 0.0, 128
        %1957 = vxpose.xlu0.b32.cont [9/16] 0.0, 128
        %1958 = vxpose.xlu0.b32.cont [10/16] 0.0, 128
        %1959 = vxpose.xlu0.b32.cont [11/16] 0.0, 128
        %1960 = vxpose.xlu0.b32.cont [12/16] 0.0, 128
        %1961 = vxpose.xlu0.b32.cont [13/16] 0.0, 128
        %1962 = vxpose.xlu0.b32.cont [14/16] 0.0, 128
        %1963 = vxpose.xlu0.b32.cont [15/16] 0.0, 128
        %1964 = vxpose.xlu0.b32.end [16/16] 0.0, 128
        %v1965 = vpop.trf.xlu0
        %v1966 = vpop.trf.xlu0
        %v1967 = vpop.trf.xlu0
        %v1968 = vpop.trf.xlu0
        %v1969 = vpop.trf.xlu0
        %v1970 = vpop.trf.xlu0
        %v1971 = vpop.trf.xlu0
        %v1972 = vpop.trf.xlu0
        %v1973 = vpop.trf.xlu0
        %v1974 = vpop.trf.xlu0
        %v1975 = vpop.trf.xlu0
        %v1976 = vpop.trf.xlu0
        %v1977 = vpop.trf.xlu0
        %v1978 = vpop.trf.xlu0
        %v1979 = vpop.trf.xlu0
        %v1980 = vpop.trf.xlu0
        %1981 = vxpose.xlu0.b32.start [1/16] %v1880, 128
        %1982 = vxpose.xlu0.b32.cont [2/16] 0.0, 128
        %1983 = vxpose.xlu0.b32.cont [3/16] 0.0, 128
        %1984 = vxpose.xlu0.b32.cont [4/16] 0.0, 128
        %1985 = vxpose.xlu0.b32.cont [5/16] 0.0, 128
        %1986 = vxpose.xlu0.b32.cont [6/16] 0.0, 128
        %1987 = vxpose.xlu0.b32.cont [7/16] 0.0, 128
        %1988 = vxpose.xlu0.b32.cont [8/16] 0.0, 128
        %1989 = vxpose.xlu0.b32.cont [9/16] 0.0, 128
        %1990 = vxpose.xlu0.b32.cont [10/16] 0.0, 128
        %1991 = vxpose.xlu0.b32.cont [11/16] 0.0, 128
        %1992 = vxpose.xlu0.b32.cont [12/16] 0.0, 128
        %1993 = vxpose.xlu0.b32.cont [13/16] 0.0, 128
        %1994 = vxpose.xlu0.b32.cont [14/16] 0.0, 128
        %1995 = vxpose.xlu0.b32.cont [15/16] 0.0, 128
        %1996 = vxpose.xlu0.b32.end [16/16] 0.0, 128
        %v1997 = vpop.trf.xlu0
        %v1998 = vpop.trf.xlu0
        %v1999 = vpop.trf.xlu0
        %v2000 = vpop.trf.xlu0
        %v2001 = vpop.trf.xlu0
        %v2002 = vpop.trf.xlu0
        %v2003 = vpop.trf.xlu0
        %v2004 = vpop.trf.xlu0
        %v2005 = vpop.trf.xlu0
        %v2006 = vpop.trf.xlu0
        %v2007 = vpop.trf.xlu0
        %v2008 = vpop.trf.xlu0
        %v2009 = vpop.trf.xlu0
        %v2010 = vpop.trf.xlu0
        %v2011 = vpop.trf.xlu0
        %v2012 = vpop.trf.xlu0
        %v2013 = vcombine.low %v1901, %v1965
        %v2014 = vcombine.high %v1901, %v1965
        %v2016 = vunpack.c.l.s4 1983009808
        %v2017 = vunpack.c.0.s8 %v2016
        %v2018 = vlaneseq
        %v2019 = vshrl.u32 %v2018, 7
        %v2020 = vsub.s32 %v2017, %v2019
        %v2021 = vrot.slane %v2013, %v2020
        %v2023 = vunpack.c.l.s4 1983009808
        %v2024 = vunpack.c.0.s8 %v2023
        %v2025 = vlaneseq
        %v2026 = vshrl.u32 %v2025, 7
        %v2027 = vsub.s32 %v2024, %v2026
        %v2028 = vrot.slane %v2014, %v2027
        %v2029 = vcombine.low %v1933, %v1997
        %v2030 = vcombine.high %v1933, %v1997
        %v2032 = vunpack.c.l.s4 1983009808
        %v2033 = vunpack.c.0.s8 %v2032
        %v2034 = vlaneseq
        %v2035 = vshrl.u32 %v2034, 7
        %v2036 = vsub.s32 %v2033, %v2035
        %v2037 = vrot.slane %v2029, %v2036
        %v2039 = vunpack.c.l.s4 1983009808
        %v2040 = vunpack.c.0.s8 %v2039
        %v2041 = vlaneseq
        %v2042 = vshrl.u32 %v2041, 7
        %v2043 = vsub.s32 %v2040, %v2042
        %v2044 = vrot.slane %v2030, %v2043
        %v2045 = vcombine.low %v2021, %v2037
        %v2046 = vcombine.high %v2021, %v2037
        %v2048 = vunpack.c.l.s4 1934713408
        %v2049 = vunpack.c.0.s8 %v2048
        %v2050 = vlaneseq
        %v2051 = vshrl.u32 %v2050, 7
        %v2052 = vsub.s32 %v2049, %v2051
        %v2053 = vrot.slane %v2045, %v2052
        %v2055 = vunpack.c.l.s4 1934713408
        %v2056 = vunpack.c.0.s8 %v2055
        %v2057 = vlaneseq
        %v2058 = vshrl.u32 %v2057, 7
        %v2059 = vsub.s32 %v2056, %v2058
        %v2060 = vrot.slane %v2046, %v2059
        %v2061 = vcombine.low %v2028, %v2044
        %v2062 = vcombine.high %v2028, %v2044
        %v2064 = vunpack.c.l.s4 1934713408
        %v2065 = vunpack.c.0.s8 %v2064
        %v2066 = vlaneseq
        %v2067 = vshrl.u32 %v2066, 7
        %v2068 = vsub.s32 %v2065, %v2067
        %v2069 = vrot.slane %v2061, %v2068
        %v2071 = vunpack.c.l.s4 1934713408
        %v2072 = vunpack.c.0.s8 %v2071
        %v2073 = vlaneseq
        %v2074 = vshrl.u32 %v2073, 7
        %v2075 = vsub.s32 %v2072, %v2074
        %v2076 = vrot.slane %v2062, %v2075
        %v2077 = vcombine.high %v2053, 0.0
        %v2078 = vcombine.high %v2060, 0.0
        %v2079 = vcombine.high %v2069, 0.0
        %v2080 = vcombine.high %v2076, 0.0
        %v2081 = vcombine.low %v2053, %v2060
        %v2083 = vunpack.c.l.s4 1983009808
        %v2084 = vunpack.c.0.s8 %v2083
        %v2085 = vlaneseq
        %v2086 = vshrl.u32 %v2085, 7
        %v2087 = vsub.s32 %v2084, %v2086
        %v2088 = vrot.slane %v2081, %v2087
        %v2089 = vcombine.low %v2077, %v2078
        %v2091 = vunpack.c.l.s4 1983009808
        %v2092 = vunpack.c.0.s8 %v2091
        %v2093 = vlaneseq
        %v2094 = vshrl.u32 %v2093, 7
        %v2095 = vsub.s32 %v2092, %v2094
        %v2096 = vrot.slane %v2089, %v2095
        %v2097 = vcombine.low %v2069, %v2076
        %v2099 = vunpack.c.l.s4 1983009808
        %v2100 = vunpack.c.0.s8 %v2099
        %v2101 = vlaneseq
        %v2102 = vshrl.u32 %v2101, 7
        %v2103 = vsub.s32 %v2100, %v2102
        %v2104 = vrot.slane %v2097, %v2103
        %v2105 = vcombine.low %v2079, %v2080
        %v2107 = vunpack.c.l.s4 1983009808
        %v2108 = vunpack.c.0.s8 %v2107
        %v2109 = vlaneseq
        %v2110 = vshrl.u32 %v2109, 7
        %v2111 = vsub.s32 %v2108, %v2110
        %v2112 = vrot.slane %v2105, %v2111
        %v2113 = vcombine.low %v2088, %v2096
        %v2114 = vcombine.high %v2088, %v2096
        %v2116 = vunpack.c.l.s4 1934713408
        %v2117 = vunpack.c.0.s8 %v2116
        %v2118 = vlaneseq
        %v2119 = vshrl.u32 %v2118, 7
        %v2120 = vsub.s32 %v2117, %v2119
        %v2121 = vrot.slane %v2113, %v2120
        %v2123 = vunpack.c.l.s4 1934713408
        %v2124 = vunpack.c.0.s8 %v2123
        %v2125 = vlaneseq
        %v2126 = vshrl.u32 %v2125, 7
        %v2127 = vsub.s32 %v2124, %v2126
        %v2128 = vrot.slane %v2114, %v2127
        %v2129 = vcombine.low %v2104, %v2112
        %v2130 = vcombine.high %v2104, %v2112
        %v2132 = vunpack.c.l.s4 1934713408
        %v2133 = vunpack.c.0.s8 %v2132
        %v2134 = vlaneseq
        %v2135 = vshrl.u32 %v2134, 7
        %v2136 = vsub.s32 %v2133, %v2135
        %v2137 = vrot.slane %v2129, %v2136
        %v2139 = vunpack.c.l.s4 1934713408
        %v2140 = vunpack.c.0.s8 %v2139
        %v2141 = vlaneseq
        %v2142 = vshrl.u32 %v2141, 7
        %v2143 = vsub.s32 %v2140, %v2142
        %v2144 = vrot.slane %v2130, %v2143
        %v2145 = vcombine.low %v2121, %v2137
        %v2146 = vcombine.high %v2121, %v2137
        %v2147 = vcombine.low %v2128, %v2144
        %v2148 = vcombine.high %v2128, %v2144
        %2150 = vrot.lane.b32.xlu0 %v2146, 8
        %v2151 = vpop.permute.xlu0 %2150
        %2154 = vrot.lane.b32.xlu0 %v2147, 16
        %v2155 = vpop.permute.xlu0 %2154
        %2158 = vrot.lane.b32.xlu0 %v2148, 24
        %v2159 = vpop.permute.xlu0 %2158
        %v2161 = vsel %vm1049, %v2145, %v2151
        %vm2162 = vcmask 130048
        %v2163 = vsel %vm2162, %v2161, %v2155
        %vm2164 = vcmask 195584
        %v2165 = vsel %vm2164, %v2163, %v2159
        %2166 = vst.msk [vmem:[%s233] sm:$0xff] %vm263, %v2165
        %s2167 = sand.u32 %s121, 1
        %s2168 = scalar_lea.sflag [#allocation4], %s2167
        %s2169 = sand.u32 %s121, 1
        %s2170 = smul.addr %s2169, 8
        %s2171 = scalar_lea.vmem [#allocation7], %s2170
        // Predicated region
        $region41: #{tpu_custom_call.1} parent=31 // pred_check
          %p2172 = pneg %p131
        $region42: #{tpu_custom_call.1} parent=31 // pred_check_branch
          %2174 = sbr.rel (%p2172) target = $region44
        $region43: #{tpu_custom_call.1} parent=31 // pred_region
          %s2176 = ssub.s32 128, 128
          %2177 = vsyncadd %s2168, %s2176
          %s2178 = sadd.s32 %s26, %s25
          %s2179 = smul.addr %s2178, 128
          %s2180 = scalar_lea.hbm %s3, %s2179
          %s2182 = sshll.u32 %s2171, 4
          %s2183 = int_to_ptr.vmem [resolvable:$true] %s2182
          %2185 = dma.vmem_to_hbm [thread:$0]  %s2183, 128, %s2180, %s2168
        $region44: #{tpu_custom_call.1} parent=31 // pred_fallthru
          _
      $region32: #{tpu_custom_call.1} parent=5 // pred_fallthru
        _
      %p2186 = scmp.le.s32.totalorder 2, %s16
      // Predicated region
      $region45: #{tpu_custom_call.1} parent=5 // pred_check
        %p2187 = pneg %p2186
      $region46: #{tpu_custom_call.1} parent=5 // pred_check_branch
        %2189 = sbr.rel (%p2187) target = $region48
      $region47: #{tpu_custom_call.1} parent=5 // pred_region
        %s2190 = ssub.s32 %s16, 2
        // Predicated region
        $region49: #{tpu_custom_call.1} parent=47 // pred_check
          %p2191 = pneg %p137
        $region50: #{tpu_custom_call.1} parent=47 // pred_check_branch
          %2193 = sbr.rel (%p2191) target = $region52
        $region51: #{tpu_custom_call.1} parent=47 // pred_region
          %s2194 = sand.u32 %s122, 1
          %s2195 = scalar_lea.sflag [#allocation4], %s2194
          %s2196 = sand.u32 %s122, 1
          %s2197 = smul.addr %s2196, 8
          %s2198 = scalar_lea.vmem [#allocation7], %s2197
          %2199 = dma.done %s2195, 128
        $region52: #{tpu_custom_call.1} parent=47 // pred_fallthru
          _
      $region48: #{tpu_custom_call.1} parent=5 // pred_fallthru
        _
    $region6: #{tpu_custom_call.1} parent=1 // loop_footer
      %s20 = sadd.s32 1, %s16
    $region7: #{tpu_custom_call.1} parent=1 // loop_footer_branch
      %15 = sbr.rel target = $region3
    $region8: #{tpu_custom_call.1} parent=1 // loop_exit
      _
    %2200 = vsyncpa [#allocation3], 1
    %s2201 = scalar_lea.sflag [#allocation3], 1
    %2202 = vsyncpa %s2201, 1
    %2203 = vsyncpa [#allocation6], 1
    %2204 = vsyncpa [#allocation4], 1
    %s2205 = scalar_lea.sflag [#allocation4], 1
    %2206 = vsyncpa %s2205, 1

</llo_original>
